<compile_context>
chip_gen: v7x
topology: tpu7x:2x2x1
jax: 0.10.0
libtpu: 0.0.40
codegen_flags: <defaults>
</compile_context>

<pallas_src>
import jax
import jax.numpy as jnp
from jax import lax
from jax.experimental import pallas as pl
from jax.experimental.pallas import tpu as pltpu

POL = 11 * 17            # 187 policy logits
IN_FEATS = 2 * POL       # 374
HID = 256
OUT_RAW = POL + 1        # 188 = width of the PyTorch final Linear
OUT_PAD = 256            # lane-aligned head-matmul width
VALUE_COL = POL          # after permutation, column 187 carries the value head
NEG_SLOPE = 0.01         # nn.LeakyReLU default


def _leaky_relu(h):
    # max(h, 0.01*h): 2 VPU ops instead of cmp+select+mul.
    return jnp.maximum(h, NEG_SLOPE * h)


def policy_net_kernel(
    x_ref, y_ref,
    w1x_ref, w1y_ref, b1_ref,
    w2_ref, b2_ref, w3_ref, b3_ref, w4_ref, b4_ref,
    w5_ref, b5_ref, w6_ref, b6_ref,
    w7_ref, b7_ref,
    value_ref, lp_ref,
):
    # First Linear as split-K over the two boards (replaces the concatenate).
    xb = x_ref[...].astype(jnp.bfloat16)   # no-op when the producer emits bf16
    yb = y_ref[...].astype(jnp.bfloat16)
    h = (jnp.dot(xb, w1x_ref[...], preferred_element_type=jnp.float32)
         + jnp.dot(yb, w1y_ref[...], preferred_element_type=jnp.float32)
         + b1_ref[...])
    h = _leaky_relu(h)

    # 5 hidden Linear(256,256) + LeakyReLU (bf16 matmul, f32 accumulate).
    for w_ref, b_ref in ((w2_ref, b2_ref), (w3_ref, b3_ref), (w4_ref, b4_ref),
                         (w5_ref, b5_ref), (w6_ref, b6_ref)):
        h = jnp.dot(h.astype(jnp.bfloat16), w_ref[...],
                    preferred_element_type=jnp.float32) + b_ref[...]
        h = _leaky_relu(h)

    # Lane-dense head matmul: cols 0:186 policy, col 187 value, 188:255 zero.
    foo = jnp.dot(h.astype(jnp.bfloat16), w7_ref[...],
                  preferred_element_type=jnp.float32) + b7_ref[...]   # (TB,256)

    col = lax.broadcasted_iota(jnp.int32, foo.shape, 1)
    is_pol = col < POL

    # logsumexp over the 187 policy columns only (padding masked to -inf).
    masked = jnp.where(is_pol, foo, -jnp.inf)
    m = jnp.max(masked, axis=1, keepdims=True)
    lse = m + jnp.log(jnp.sum(jnp.exp(masked - m), axis=1, keepdims=True))

    # Stable logsigmoid; sigmoid(value) = exp(logsigmoid(value)).
    logsig = jnp.minimum(foo, 0.0) - jnp.log(1.0 + jnp.exp(-jnp.abs(foo)))

    # Value head: pick col 187 via a masked row-reduce (avoids an unaligned
    # 1-lane slice), then exponentiate.
    value_ref[...] = jnp.exp(
        jnp.sum(jnp.where(col == VALUE_COL, logsig, 0.0), axis=1, keepdims=True))

    # Policy head: aligned 187-lane slice, written straight to the output.
    lp_ref[...] = logsig[:, :POL] - lse


def _round_up(n, m):
    return ((n + m - 1) // m) * m


def _choose_batch_tile(B):
    """Static batch-tile choice (B is known at trace time)."""
    if B < 128:
        return B                          # single block; dims == full array dims
    if B >= 1024:
        TB = 1024                         # cap: stays inside v7x's 64 MiB VMEM
    elif B >= 512:
        TB = 512
    elif B >= 256:
        TB = 256
    else:
        TB = (B // 8) * 8                 # 128..255: largest multiple of 8 <= B
    if pl.cdiv(B, TB) == 1:
        # Guarantee >= 2 grid steps so both v7x TensorCores get work.
        TB = max(8, _round_up(TB // 2, 8))
    return TB


def pack_params(params):
    """One-time repack of the 7 Linear layers for the kernel: bf16 weights,
    W1 split into x/y halves, head weight permuted (policy -> cols 0:186,
    value -> col 187) and zero-padded to a lane-dense 256-wide slab."""
    (w1, b1, w2, b2, w3, b3, w4, b4, w5, b5, w6, b6, w7, b7) = params
    w1x = w1[:POL].astype(jnp.bfloat16)
    w1y = w1[POL:].astype(jnp.bfloat16)
    zpad_w = jnp.zeros((HID, OUT_PAD - OUT_RAW), jnp.float32)
    zpad_b = jnp.zeros((1, OUT_PAD - OUT_RAW), jnp.float32)
    w7p = jnp.concatenate([w7[:, 1:], w7[:, 0:1], zpad_w], 1).astype(jnp.bfloat16)
    b7p = jnp.concatenate([b7[:, 1:], b7[:, 0:1], zpad_b], 1)
    hid = []
    for w, b in ((w2, b2), (w3, b3), (w4, b4), (w5, b5), (w6, b6)):
        hid += [w.astype(jnp.bfloat16), b]
    return (w1x, w1y, b1, *hid, w7p, b7p)


@jax.jit
def policy_net_forward(x, y, packed):
    """x, y: (B, 11, 17) (f32 or bf16). Returns (value (B,1), logpolicy (B,11,17))."""
    B = x.shape[0]
    TB = _choose_batch_tile(B)
    grid = (pl.cdiv(B, TB),)

    x_flat = x.reshape(B, POL)
    y_flat = y.reshape(B, POL)

    def const_spec(shape):
        # Whole array, same block every step -> stays VMEM resident.
        return pl.BlockSpec(shape, lambda i, _n=len(shape): (0,) * _n)

    in_specs = [
        pl.BlockSpec((TB, POL), lambda i: (i, 0)),        # x tile
        pl.BlockSpec((TB, POL), lambda i: (i, 0)),        # y tile
        const_spec((POL, HID)), const_spec((POL, HID)), const_spec((1, HID)),
        const_spec((HID, HID)), const_spec((1, HID)),
        const_spec((HID, HID)), const_spec((1, HID)),
        const_spec((HID, HID)), const_spec((1, HID)),
        const_spec((HID, HID)), const_spec((1, HID)),
        const_spec((HID, HID)), const_spec((1, HID)),
        const_spec((HID, OUT_PAD)), const_spec((1, OUT_PAD)),
    ]
    out_specs = (pl.BlockSpec((TB, 1), lambda i: (i, 0)),      # value
                 pl.BlockSpec((TB, POL), lambda i: (i, 0)))    # logpolicy
    out_shape = (jax.ShapeDtypeStruct((B, 1), jnp.float32),
                 jax.ShapeDtypeStruct((B, POL), jnp.float32))

    in_bytes = x_flat.dtype.itemsize
    matmul_elems = IN_FEATS * HID + 5 * HID * HID + HID * OUT_PAD
    cost = pl.CostEstimate(
        flops=2 * B * matmul_elems,
        transcendentals=6 * B * OUT_PAD,
        bytes_accessed=(in_bytes * B * IN_FEATS       # input tiles
                        + 2 * matmul_elems            # bf16 weights
                        + 4 * (6 * HID + OUT_PAD)     # f32 biases
                        + 4 * B * OUT_RAW),           # f32 outputs
    )

    value, logpolicy = pl.pallas_call(
        policy_net_kernel,
        out_shape=out_shape,
        grid=grid,
        in_specs=in_specs,
        out_specs=out_specs,
        compiler_params=pltpu.CompilerParams(
            dimension_semantics=("parallel",),
            vmem_limit_bytes=32 * 1024 * 1024),
        cost_estimate=cost,
    )(x_flat, y_flat, *packed)

    return value, logpolicy.reshape(B, 11, 17)


def init_params(key):
    """Deterministic Linear params: W stored as (in, out), b as (1, out), f32."""
    dims = [IN_FEATS, HID, HID, HID, HID, HID, HID, OUT_RAW]
    params = []
    for i in range(7):
        key, kw, kb = jax.random.split(key, 3)
        fan_in, fan_out = dims[i], dims[i + 1]
        bound = 1.0 / jnp.sqrt(jnp.float32(fan_in))
        w = jax.random.uniform(kw, (fan_in, fan_out), jnp.float32, -bound, bound)
        b = jax.random.uniform(kb, (1, fan_out), jnp.float32, -bound, bound)
        params += [w, b]
    return tuple(params)


def _reference_forward(x, y, params):
    """Pure-jnp f32 reference of the PyTorch forward (for a sanity check)."""
    B = x.shape[0]
    h = jnp.concatenate([x.reshape(B, -1), y.reshape(B, -1)], axis=1)
    (w1, b1, w2, b2, w3, b3, w4, b4, w5, b5, w6, b6, w7, b7) = params
    for w, b in ((w1, b1), (w2, b2), (w3, b3), (w4, b4), (w5, b5), (w6, b6)):
        h = h @ w + b
        h = jnp.where(h > 0, h, NEG_SLOPE * h)
    foo = h @ w7 + b7
    value = jax.nn.sigmoid(foo[:, 0]).reshape(-1, 1)
    policy = foo[:, 1:]
    logpolicy = jax.nn.log_sigmoid(policy) - jax.scipy.special.logsumexp(
        policy, axis=1, keepdims=True)
    return value, logpolicy.reshape(B, 11, 17)


if __name__ == "__main__":
    key = jax.random.PRNGKey(0)
    kp, kx, ky = jax.random.split(key, 3)

    params = init_params(kp)
    packed = pack_params(params)      # one-time weight repack (outside the jit)

    B = 2
    # Producer emits bf16 boards (game-state features are exactly
    # representable); this halves the kernel's dominant HBM input stream.
    x = jax.random.normal(kx, (B, 11, 17), jnp.float32).astype(jnp.bfloat16)
    y = jax.random.normal(ky, (B, 11, 17), jnp.float32).astype(jnp.bfloat16)

    value, logpolicy = policy_net_forward(x, y, packed)
    value, logpolicy = jax.block_until_ready((value, logpolicy))

    # Sanity check against a pure-JAX f32 reference (kernel matmuls are bf16,
    # so the tolerance is loosened accordingly).
    v_ref, lp_ref = _reference_forward(x.astype(jnp.float32),
                                       y.astype(jnp.float32), params)
    assert value.shape == (B, 1) and logpolicy.shape == (B, 11, 17)
    assert jnp.allclose(value, v_ref, atol=2e-2, rtol=2e-2)
    assert jnp.allclose(logpolicy, lp_ref, atol=2e-2, rtol=2e-2)

    # TODO(synk): PolicyNet.save/load (torch state_dict disk I/O) has no kernel
    # equivalent; parameters are built in-script instead.
    print("KERNEL_OK")
</pallas_src>

<mosaic_0001>
module attributes {stable_mosaic.version = 11 : i64} {
  func.func @policy_net_kernel(%arg0: i32, %arg1: memref<2x187xbf16, #tpu.memory_space<vmem>>, %arg2: memref<2x187xbf16, #tpu.memory_space<vmem>>, %arg3: memref<187x256xbf16, #tpu.memory_space<vmem>>, %arg4: memref<187x256xbf16, #tpu.memory_space<vmem>>, %arg5: memref<1x256xf32, #tpu.memory_space<vmem>>, %arg6: memref<256x256xbf16, #tpu.memory_space<vmem>>, %arg7: memref<1x256xf32, #tpu.memory_space<vmem>>, %arg8: memref<256x256xbf16, #tpu.memory_space<vmem>>, %arg9: memref<1x256xf32, #tpu.memory_space<vmem>>, %arg10: memref<256x256xbf16, #tpu.memory_space<vmem>>, %arg11: memref<1x256xf32, #tpu.memory_space<vmem>>, %arg12: memref<256x256xbf16, #tpu.memory_space<vmem>>, %arg13: memref<1x256xf32, #tpu.memory_space<vmem>>, %arg14: memref<256x256xbf16, #tpu.memory_space<vmem>>, %arg15: memref<1x256xf32, #tpu.memory_space<vmem>>, %arg16: memref<256x256xbf16, #tpu.memory_space<vmem>>, %arg17: memref<1x256xf32, #tpu.memory_space<vmem>>, %arg18: memref<2x1xf32, #tpu.memory_space<vmem>>, %arg19: memref<2x187xf32, #tpu.memory_space<vmem>>) attributes {dimension_semantics = [#tpu.dimension_semantics<parallel>], iteration_bounds = array<i64: 1>, scalar_prefetch = 0 : i64, scratch_operands = 0 : i64, tpu.core_type = #tpu.core_type<tc>, window_params = [{transform_indices = @transform_0, window_bounds = array<i64: 2, 187>}, {transform_indices = @transform_1, window_bounds = array<i64: 2, 187>}, {pipeline_mode = #tpu.pipeline_mode<synchronous>, transform_indices = @transform_2, window_bounds = array<i64: 187, 256>}, {pipeline_mode = #tpu.pipeline_mode<synchronous>, transform_indices = @transform_3, window_bounds = array<i64: 187, 256>}, {pipeline_mode = #tpu.pipeline_mode<synchronous>, transform_indices = @transform_4, window_bounds = array<i64: 1, 256>}, {pipeline_mode = #tpu.pipeline_mode<synchronous>, transform_indices = @transform_5, window_bounds = array<i64: 256, 256>}, {pipeline_mode = #tpu.pipeline_mode<synchronous>, transform_indices = @transform_6, window_bounds = array<i64: 1, 256>}, {pipeline_mode = #tpu.pipeline_mode<synchronous>, transform_indices = @transform_7, window_bounds = array<i64: 256, 256>}, {pipeline_mode = #tpu.pipeline_mode<synchronous>, transform_indices = @transform_8, window_bounds = array<i64: 1, 256>}, {pipeline_mode = #tpu.pipeline_mode<synchronous>, transform_indices = @transform_9, window_bounds = array<i64: 256, 256>}, {pipeline_mode = #tpu.pipeline_mode<synchronous>, transform_indices = @transform_10, window_bounds = array<i64: 1, 256>}, {pipeline_mode = #tpu.pipeline_mode<synchronous>, transform_indices = @transform_11, window_bounds = array<i64: 256, 256>}, {pipeline_mode = #tpu.pipeline_mode<synchronous>, transform_indices = @transform_12, window_bounds = array<i64: 1, 256>}, {pipeline_mode = #tpu.pipeline_mode<synchronous>, transform_indices = @transform_13, window_bounds = array<i64: 256, 256>}, {pipeline_mode = #tpu.pipeline_mode<synchronous>, transform_indices = @transform_14, window_bounds = array<i64: 1, 256>}, {pipeline_mode = #tpu.pipeline_mode<synchronous>, transform_indices = @transform_15, window_bounds = array<i64: 256, 256>}, {pipeline_mode = #tpu.pipeline_mode<synchronous>, transform_indices = @transform_16, window_bounds = array<i64: 1, 256>}, {transform_indices = @transform_17, window_bounds = array<i64: 2, 1>}, {transform_indices = @transform_18, window_bounds = array<i64: 2, 187>}]} {
    %c0 = arith.constant 0 : index
    %c0_0 = arith.constant 0 : index
    %0 = vector.load %arg1[%c0, %c0_0] : memref<2x187xbf16, #tpu.memory_space<vmem>>, vector<2x187xbf16>
    %c0_1 = arith.constant 0 : index
    %c0_2 = arith.constant 0 : index
    %1 = vector.load %arg2[%c0_1, %c0_2] : memref<2x187xbf16, #tpu.memory_space<vmem>>, vector<2x187xbf16>
    %c0_3 = arith.constant 0 : index
    %c0_4 = arith.constant 0 : index
    %2 = vector.load %arg3[%c0_3, %c0_4] : memref<187x256xbf16, #tpu.memory_space<vmem>>, vector<187x256xbf16>
    %cst = arith.constant dense<0.000000e+00> : vector<2x256xf32>
    %3 = tpu.matmul %0, %2, %cst {dimension_numbers = #tpu.dot_dimension_numbers<[1], [0], [0], [1], [0, 0, 1, 1], [], []>} : vector<2x187xbf16>, vector<187x256xbf16>, vector<2x256xf32> -> vector<2x256xf32>
    %c0_5 = arith.constant 0 : index
    %c0_6 = arith.constant 0 : index
    %4 = vector.load %arg4[%c0_5, %c0_6] : memref<187x256xbf16, #tpu.memory_space<vmem>>, vector<187x256xbf16>
    %cst_7 = arith.constant dense<0.000000e+00> : vector<2x256xf32>
    %5 = tpu.matmul %1, %4, %cst_7 {dimension_numbers = #tpu.dot_dimension_numbers<[1], [0], [0], [1], [0, 0, 1, 1], [], []>} : vector<2x187xbf16>, vector<187x256xbf16>, vector<2x256xf32> -> vector<2x256xf32>
    %6 = arith.addf %3, %5 : vector<2x256xf32>
    %c0_8 = arith.constant 0 : index
    %c0_9 = arith.constant 0 : index
    %7 = vector.load %arg5[%c0_8, %c0_9] : memref<1x256xf32, #tpu.memory_space<vmem>>, vector<1x256xf32>
    %8 = vector.broadcast %7 : vector<1x256xf32> to vector<2x256xf32>
    %9 = arith.addf %6, %8 : vector<2x256xf32>
    %cst_10 = arith.constant 0.00999999977 : f32
    %10 = vector.broadcast %cst_10 : f32 to vector<2x256xf32>
    %11 = arith.mulf %10, %9 : vector<2x256xf32>
    %12 = arith.maximumf %9, %11 : vector<2x256xf32>
    %13 = arith.truncf %12 : vector<2x256xf32> to vector<2x256xbf16>
    %c0_11 = arith.constant 0 : index
    %c0_12 = arith.constant 0 : index
    %14 = vector.load %arg6[%c0_11, %c0_12] : memref<256x256xbf16, #tpu.memory_space<vmem>>, vector<256x256xbf16>
    %cst_13 = arith.constant dense<0.000000e+00> : vector<2x256xf32>
    %15 = tpu.matmul %13, %14, %cst_13 {dimension_numbers = #tpu.dot_dimension_numbers<[1], [0], [0], [1], [0, 0, 1, 1], [], []>} : vector<2x256xbf16>, vector<256x256xbf16>, vector<2x256xf32> -> vector<2x256xf32>
    %c0_14 = arith.constant 0 : index
    %c0_15 = arith.constant 0 : index
    %16 = vector.load %arg7[%c0_14, %c0_15] : memref<1x256xf32, #tpu.memory_space<vmem>>, vector<1x256xf32>
    %17 = vector.broadcast %16 : vector<1x256xf32> to vector<2x256xf32>
    %18 = arith.addf %15, %17 : vector<2x256xf32>
    %cst_16 = arith.constant 0.00999999977 : f32
    %19 = vector.broadcast %cst_16 : f32 to vector<2x256xf32>
    %20 = arith.mulf %19, %18 : vector<2x256xf32>
    %21 = arith.maximumf %18, %20 : vector<2x256xf32>
    %22 = arith.truncf %21 : vector<2x256xf32> to vector<2x256xbf16>
    %c0_17 = arith.constant 0 : index
    %c0_18 = arith.constant 0 : index
    %23 = vector.load %arg8[%c0_17, %c0_18] : memref<256x256xbf16, #tpu.memory_space<vmem>>, vector<256x256xbf16>
    %cst_19 = arith.constant dense<0.000000e+00> : vector<2x256xf32>
    %24 = tpu.matmul %22, %23, %cst_19 {dimension_numbers = #tpu.dot_dimension_numbers<[1], [0], [0], [1], [0, 0, 1, 1], [], []>} : vector<2x256xbf16>, vector<256x256xbf16>, vector<2x256xf32> -> vector<2x256xf32>
    %c0_20 = arith.constant 0 : index
    %c0_21 = arith.constant 0 : index
    %25 = vector.load %arg9[%c0_20, %c0_21] : memref<1x256xf32, #tpu.memory_space<vmem>>, vector<1x256xf32>
    %26 = vector.broadcast %25 : vector<1x256xf32> to vector<2x256xf32>
    %27 = arith.addf %24, %26 : vector<2x256xf32>
    %cst_22 = arith.constant 0.00999999977 : f32
    %28 = vector.broadcast %cst_22 : f32 to vector<2x256xf32>
    %29 = arith.mulf %28, %27 : vector<2x256xf32>
    %30 = arith.maximumf %27, %29 : vector<2x256xf32>
    %31 = arith.truncf %30 : vector<2x256xf32> to vector<2x256xbf16>
    %c0_23 = arith.constant 0 : index
    %c0_24 = arith.constant 0 : index
    %32 = vector.load %arg10[%c0_23, %c0_24] : memref<256x256xbf16, #tpu.memory_space<vmem>>, vector<256x256xbf16>
    %cst_25 = arith.constant dense<0.000000e+00> : vector<2x256xf32>
    %33 = tpu.matmul %31, %32, %cst_25 {dimension_numbers = #tpu.dot_dimension_numbers<[1], [0], [0], [1], [0, 0, 1, 1], [], []>} : vector<2x256xbf16>, vector<256x256xbf16>, vector<2x256xf32> -> vector<2x256xf32>
    %c0_26 = arith.constant 0 : index
    %c0_27 = arith.constant 0 : index
    %34 = vector.load %arg11[%c0_26, %c0_27] : memref<1x256xf32, #tpu.memory_space<vmem>>, vector<1x256xf32>
    %35 = vector.broadcast %34 : vector<1x256xf32> to vector<2x256xf32>
    %36 = arith.addf %33, %35 : vector<2x256xf32>
    %cst_28 = arith.constant 0.00999999977 : f32
    %37 = vector.broadcast %cst_28 : f32 to vector<2x256xf32>
    %38 = arith.mulf %37, %36 : vector<2x256xf32>
    %39 = arith.maximumf %36, %38 : vector<2x256xf32>
    %40 = arith.truncf %39 : vector<2x256xf32> to vector<2x256xbf16>
    %c0_29 = arith.constant 0 : index
    %c0_30 = arith.constant 0 : index
    %41 = vector.load %arg12[%c0_29, %c0_30] : memref<256x256xbf16, #tpu.memory_space<vmem>>, vector<256x256xbf16>
    %cst_31 = arith.constant dense<0.000000e+00> : vector<2x256xf32>
    %42 = tpu.matmul %40, %41, %cst_31 {dimension_numbers = #tpu.dot_dimension_numbers<[1], [0], [0], [1], [0, 0, 1, 1], [], []>} : vector<2x256xbf16>, vector<256x256xbf16>, vector<2x256xf32> -> vector<2x256xf32>
    %c0_32 = arith.constant 0 : index
    %c0_33 = arith.constant 0 : index
    %43 = vector.load %arg13[%c0_32, %c0_33] : memref<1x256xf32, #tpu.memory_space<vmem>>, vector<1x256xf32>
    %44 = vector.broadcast %43 : vector<1x256xf32> to vector<2x256xf32>
    %45 = arith.addf %42, %44 : vector<2x256xf32>
    %cst_34 = arith.constant 0.00999999977 : f32
    %46 = vector.broadcast %cst_34 : f32 to vector<2x256xf32>
    %47 = arith.mulf %46, %45 : vector<2x256xf32>
    %48 = arith.maximumf %45, %47 : vector<2x256xf32>
    %49 = arith.truncf %48 : vector<2x256xf32> to vector<2x256xbf16>
    %c0_35 = arith.constant 0 : index
    %c0_36 = arith.constant 0 : index
    %50 = vector.load %arg14[%c0_35, %c0_36] : memref<256x256xbf16, #tpu.memory_space<vmem>>, vector<256x256xbf16>
    %cst_37 = arith.constant dense<0.000000e+00> : vector<2x256xf32>
    %51 = tpu.matmul %49, %50, %cst_37 {dimension_numbers = #tpu.dot_dimension_numbers<[1], [0], [0], [1], [0, 0, 1, 1], [], []>} : vector<2x256xbf16>, vector<256x256xbf16>, vector<2x256xf32> -> vector<2x256xf32>
    %c0_38 = arith.constant 0 : index
    %c0_39 = arith.constant 0 : index
    %52 = vector.load %arg15[%c0_38, %c0_39] : memref<1x256xf32, #tpu.memory_space<vmem>>, vector<1x256xf32>
    %53 = vector.broadcast %52 : vector<1x256xf32> to vector<2x256xf32>
    %54 = arith.addf %51, %53 : vector<2x256xf32>
    %cst_40 = arith.constant 0.00999999977 : f32
    %55 = vector.broadcast %cst_40 : f32 to vector<2x256xf32>
    %56 = arith.mulf %55, %54 : vector<2x256xf32>
    %57 = arith.maximumf %54, %56 : vector<2x256xf32>
    %58 = arith.truncf %57 : vector<2x256xf32> to vector<2x256xbf16>
    %c0_41 = arith.constant 0 : index
    %c0_42 = arith.constant 0 : index
    %59 = vector.load %arg16[%c0_41, %c0_42] : memref<256x256xbf16, #tpu.memory_space<vmem>>, vector<256x256xbf16>
    %cst_43 = arith.constant dense<0.000000e+00> : vector<2x256xf32>
    %60 = tpu.matmul %58, %59, %cst_43 {dimension_numbers = #tpu.dot_dimension_numbers<[1], [0], [0], [1], [0, 0, 1, 1], [], []>} : vector<2x256xbf16>, vector<256x256xbf16>, vector<2x256xf32> -> vector<2x256xf32>
    %c0_44 = arith.constant 0 : index
    %c0_45 = arith.constant 0 : index
    %61 = vector.load %arg17[%c0_44, %c0_45] : memref<1x256xf32, #tpu.memory_space<vmem>>, vector<1x256xf32>
    %62 = vector.broadcast %61 : vector<1x256xf32> to vector<2x256xf32>
    %63 = arith.addf %60, %62 : vector<2x256xf32>
    %64 = tpu.iota {dimensions = array<i32: 1>} : vector<2x256xi32>
    %c187_i32 = arith.constant 187 : i32
    %65 = vector.broadcast %c187_i32 : i32 to vector<2x256xi32>
    %66 = arith.cmpi slt, %64, %65 : vector<2x256xi32>
    %cst_46 = arith.constant 0xFF800000 : f32
    %67 = vector.broadcast %cst_46 : f32 to vector<2x256xf32>
    %68 = arith.select %66, %63, %67 : vector<2x256xi1>, vector<2x256xf32>
    %cst_47 = arith.constant dense<0xFF800000> : vector<2xf32>
    %69 = vector.multi_reduction <maximumf>, %68, %cst_47 [1] : vector<2x256xf32> to vector<2xf32>
    %70 = vector.shape_cast %69 : vector<2xf32> to vector<2x1xf32>
    %71 = vector.broadcast %70 : vector<2x1xf32> to vector<2x256xf32>
    %72 = arith.subf %68, %71 : vector<2x256xf32>
    %73 = math.exp %72 : vector<2x256xf32>
    %cst_48 = arith.constant dense<0.000000e+00> : vector<2xf32>
    %74 = vector.multi_reduction <add>, %73, %cst_48 [1] : vector<2x256xf32> to vector<2xf32>
    %75 = vector.shape_cast %74 : vector<2xf32> to vector<2x1xf32>
    %76 = math.log %75 : vector<2x1xf32>
    %77 = arith.addf %70, %76 : vector<2x1xf32>
    %cst_49 = arith.constant 0.000000e+00 : f32
    %78 = vector.broadcast %cst_49 : f32 to vector<2x256xf32>
    %79 = arith.minimumf %63, %78 : vector<2x256xf32>
    %80 = math.absf %63 : vector<2x256xf32>
    %cst_50 = arith.constant 0.000000e+00 : f32
    %81 = vector.broadcast %cst_50 : f32 to vector<2x256xf32>
    %82 = arith.subf %81, %80 : vector<2x256xf32>
    %83 = math.exp %82 : vector<2x256xf32>
    %cst_51 = arith.constant 1.000000e+00 : f32
    %84 = vector.broadcast %cst_51 : f32 to vector<2x256xf32>
    %85 = arith.addf %84, %83 : vector<2x256xf32>
    %86 = math.log %85 : vector<2x256xf32>
    %87 = arith.subf %79, %86 : vector<2x256xf32>
    %c187_i32_52 = arith.constant 187 : i32
    %88 = vector.broadcast %c187_i32_52 : i32 to vector<2x256xi32>
    %89 = arith.cmpi eq, %64, %88 : vector<2x256xi32>
    %cst_53 = arith.constant 0.000000e+00 : f32
    %90 = vector.broadcast %cst_53 : f32 to vector<2x256xf32>
    %91 = arith.select %89, %87, %90 : vector<2x256xi1>, vector<2x256xf32>
    %cst_54 = arith.constant dense<0.000000e+00> : vector<2xf32>
    %92 = vector.multi_reduction <add>, %91, %cst_54 [1] : vector<2x256xf32> to vector<2xf32>
    %93 = vector.shape_cast %92 : vector<2xf32> to vector<2x1xf32>
    %94 = math.exp %93 : vector<2x1xf32>
    %c0_55 = arith.constant 0 : index
    %c0_56 = arith.constant 0 : index
    %95 = vector.load %arg18[%c0_55, %c0_56] : memref<2x1xf32, #tpu.memory_space<vmem>>, vector<2x1xf32>
    tpu.vector_store %arg18[%c0_55, %c0_56], %94 {strides = array<i32>} : memref<2x1xf32, #tpu.memory_space<vmem>>, vector<2x1xf32>,
    %96 = vector.extract_strided_slice %87 {offsets = [0, 0], sizes = [2, 187], strides = [1, 1]} : vector<2x256xf32> to vector<2x187xf32>
    %97 = vector.broadcast %77 : vector<2x1xf32> to vector<2x187xf32>
    %98 = arith.subf %96, %97 : vector<2x187xf32>
    %c0_57 = arith.constant 0 : index
    %c0_58 = arith.constant 0 : index
    %99 = vector.load %arg19[%c0_57, %c0_58] : memref<2x187xf32, #tpu.memory_space<vmem>>, vector<2x187xf32>
    tpu.vector_store %arg19[%c0_57, %c0_58], %98 {strides = array<i32>} : memref<2x187xf32, #tpu.memory_space<vmem>>, vector<2x187xf32>,
    return
  }
  func.func @transform_0(%arg0: i32) -> (i32, i32) {
    %c0_i32 = arith.constant 0 : i32
    %c0_i32_0 = arith.constant 0 : i32
    return %arg0, %c0_i32 : i32, i32
  }
  func.func @transform_1(%arg0: i32) -> (i32, i32) {
    %c0_i32 = arith.constant 0 : i32
    %c0_i32_0 = arith.constant 0 : i32
    return %arg0, %c0_i32 : i32, i32
  }
  func.func @transform_2(%arg0: i32) -> (i32, i32) {
    %c0_i32 = arith.constant 0 : i32
    %c0_i32_0 = arith.constant 0 : i32
    %c0_i32_1 = arith.constant 0 : i32
    return %c0_i32, %c0_i32_0 : i32, i32
  }
  func.func @transform_3(%arg0: i32) -> (i32, i32) {
    %c0_i32 = arith.constant 0 : i32
    %c0_i32_0 = arith.constant 0 : i32
    %c0_i32_1 = arith.constant 0 : i32
    return %c0_i32, %c0_i32_0 : i32, i32
  }
  func.func @transform_4(%arg0: i32) -> (i32, i32) {
    %c0_i32 = arith.constant 0 : i32
    %c0_i32_0 = arith.constant 0 : i32
    %c0_i32_1 = arith.constant 0 : i32
    return %c0_i32, %c0_i32_0 : i32, i32
  }
  func.func @transform_5(%arg0: i32) -> (i32, i32) {
    %c0_i32 = arith.constant 0 : i32
    %c0_i32_0 = arith.constant 0 : i32
    %c0_i32_1 = arith.constant 0 : i32
    return %c0_i32, %c0_i32_0 : i32, i32
  }
  func.func @transform_6(%arg0: i32) -> (i32, i32) {
    %c0_i32 = arith.constant 0 : i32
    %c0_i32_0 = arith.constant 0 : i32
    %c0_i32_1 = arith.constant 0 : i32
    return %c0_i32, %c0_i32_0 : i32, i32
  }
  func.func @transform_7(%arg0: i32) -> (i32, i32) {
    %c0_i32 = arith.constant 0 : i32
    %c0_i32_0 = arith.constant 0 : i32
    %c0_i32_1 = arith.constant 0 : i32
    return %c0_i32, %c0_i32_0 : i32, i32
  }
  func.func @transform_8(%arg0: i32) -> (i32, i32) {
    %c0_i32 = arith.constant 0 : i32
    %c0_i32_0 = arith.constant 0 : i32
    %c0_i32_1 = arith.constant 0 : i32
    return %c0_i32, %c0_i32_0 : i32, i32
  }
  func.func @transform_9(%arg0: i32) -> (i32, i32) {
    %c0_i32 = arith.constant 0 : i32
    %c0_i32_0 = arith.constant 0 : i32
    %c0_i32_1 = arith.constant 0 : i32
    return %c0_i32, %c0_i32_0 : i32, i32
  }
  func.func @transform_10(%arg0: i32) -> (i32, i32) {
    %c0_i32 = arith.constant 0 : i32
    %c0_i32_0 = arith.constant 0 : i32
    %c0_i32_1 = arith.constant 0 : i32
    return %c0_i32, %c0_i32_0 : i32, i32
  }
  func.func @transform_11(%arg0: i32) -> (i32, i32) {
    %c0_i32 = arith.constant 0 : i32
    %c0_i32_0 = arith.constant 0 : i32
    %c0_i32_1 = arith.constant 0 : i32
    return %c0_i32, %c0_i32_0 : i32, i32
  }
  func.func @transform_12(%arg0: i32) -> (i32, i32) {
    %c0_i32 = arith.constant 0 : i32
    %c0_i32_0 = arith.constant 0 : i32
    %c0_i32_1 = arith.constant 0 : i32
    return %c0_i32, %c0_i32_0 : i32, i32
  }
  func.func @transform_13(%arg0: i32) -> (i32, i32) {
    %c0_i32 = arith.constant 0 : i32
    %c0_i32_0 = arith.constant 0 : i32
    %c0_i32_1 = arith.constant 0 : i32
    return %c0_i32, %c0_i32_0 : i32, i32
  }
  func.func @transform_14(%arg0: i32) -> (i32, i32) {
    %c0_i32 = arith.constant 0 : i32
    %c0_i32_0 = arith.constant 0 : i32
    %c0_i32_1 = arith.constant 0 : i32
    return %c0_i32, %c0_i32_0 : i32, i32
  }
  func.func @transform_15(%arg0: i32) -> (i32, i32) {
    %c0_i32 = arith.constant 0 : i32
    %c0_i32_0 = arith.constant 0 : i32
    %c0_i32_1 = arith.constant 0 : i32
    return %c0_i32, %c0_i32_0 : i32, i32
  }
  func.func @transform_16(%arg0: i32) -> (i32, i32) {
    %c0_i32 = arith.constant 0 : i32
    %c0_i32_0 = arith.constant 0 : i32
    %c0_i32_1 = arith.constant 0 : i32
    return %c0_i32, %c0_i32_0 : i32, i32
  }
  func.func @transform_17(%arg0: i32) -> (i32, i32) {
    %c0_i32 = arith.constant 0 : i32
    %c0_i32_0 = arith.constant 0 : i32
    return %arg0, %c0_i32 : i32, i32
  }
  func.func @transform_18(%arg0: i32) -> (i32, i32) {
    %c0_i32 = arith.constant 0 : i32
    %c0_i32_0 = arith.constant 0 : i32
    return %arg0, %c0_i32 : i32, i32
  }
}

</mosaic_0001>

<llo_original>
// kernel: policy_net_forward.1
$region0: #{policy_net_forward.1}
  #allocation0 [shape = 'u32[]', space=smem, size = 0x4, offset = 0x4, fixed_abs, tag = 'smem constant byte address 0x4 - core index']
  #allocation1 [shape = 'u32[144,128]{1,0:T(1,128)}', space=vmem, size = 0x12000, scoped, tag = 'internal scratch']
  %s0 = inlined_call_operand.vmem [shape: bf16[2,187], index: 0, kind: input, shape index: {}]
  %s1 = inlined_call_operand.vmem [shape: bf16[2,187], index: 1, kind: input, shape index: {}]
  %s2 = inlined_call_operand.hbm [shape: bf16[187,256], index: 2, kind: input, shape index: {}]
  %s3 = inlined_call_operand.hbm [shape: bf16[187,256], index: 3, kind: input, shape index: {}]
  %s4 = inlined_call_operand.vmem [shape: f32[1,256], index: 4, kind: input, shape index: {}]
  %s5 = inlined_call_operand.hbm [shape: bf16[256,256], index: 5, kind: input, shape index: {}]
  %s6 = inlined_call_operand.vmem [shape: f32[1,256], index: 6, kind: input, shape index: {}]
  %s7 = inlined_call_operand.hbm [shape: bf16[256,256], index: 7, kind: input, shape index: {}]
  %s8 = inlined_call_operand.vmem [shape: f32[1,256], index: 8, kind: input, shape index: {}]
  %s9 = inlined_call_operand.hbm [shape: bf16[256,256], index: 9, kind: input, shape index: {}]
  %s10 = inlined_call_operand.vmem [shape: f32[1,256], index: 10, kind: input, shape index: {}]
  %s11 = inlined_call_operand.hbm [shape: bf16[256,256], index: 11, kind: input, shape index: {}]
  %s12 = inlined_call_operand.vmem [shape: f32[1,256], index: 12, kind: input, shape index: {}]
  %s13 = inlined_call_operand.hbm [shape: bf16[256,256], index: 13, kind: input, shape index: {}]
  %s14 = inlined_call_operand.vmem [shape: f32[1,256], index: 14, kind: input, shape index: {}]
  %s15 = inlined_call_operand.hbm [shape: bf16[256,256], index: 15, kind: input, shape index: {}]
  %s16 = inlined_call_operand.vmem [shape: f32[1,256], index: 16, kind: input, shape index: {}]
  %s17 = inlined_call_operand.vmem [shape: f32[2,1], index: 17, kind: output, shape index: {0}]
  %s18 = inlined_call_operand.vmem [shape: f32[2,187], index: 18, kind: output, shape index: {1}]
  %19 = xla_tuple %s17, %s18
  %s20 = sld [smem:[#allocation0]]
  $region118: #{policy_net_forward.1} parent=0
    _
  %s22 = ssub.s32 1, %s20
  %s23 = scalar_select 0, %s22, %s20
  $region1: #{policy_net_forward.1} parent=0
    #allocation2 [shape = 'u8[98304]{0}', space=vmem, size = 0x18000, scoped, tag = 'input window, operand 2, single buffered']
    #allocation3 [shape = 's32[1]{0}', space=sflag, size = 0x4, scoped, tag = 'scoped memory for policy_net_forward.1']
    #allocation4 [shape = 'u8[98304]{0}', space=vmem, size = 0x18000, scoped, tag = 'input window, operand 3, single buffered']
    #allocation5 [shape = 's32[1]{0}', space=sflag, size = 0x4, scoped, tag = 'scoped memory for policy_net_forward.1']
    #allocation6 [shape = 'u8[131072]{0}', space=vmem, size = 0x20000, scoped, tag = 'input window, operand 5, single buffered']
    #allocation7 [shape = 'u8[131072]{0}', space=vmem, size = 0x20000, scoped, tag = 'input window, operand 7, single buffered']
    #allocation8 [shape = 's32[1]{0}', space=sflag, size = 0x4, scoped, tag = 'scoped memory for policy_net_forward.1']
    #allocation9 [shape = 'u8[131072]{0}', space=vmem, size = 0x20000, scoped, tag = 'input window, operand 9, single buffered']
    #allocation10 [shape = 'u8[131072]{0}', space=vmem, size = 0x20000, scoped, tag = 'input window, operand 11, single buffered']
    #allocation11 [shape = 's32[1]{0}', space=sflag, size = 0x4, scoped, tag = 'scoped memory for policy_net_forward.1']
    #allocation12 [shape = 'u8[131072]{0}', space=vmem, size = 0x20000, scoped, tag = 'input window, operand 13, single buffered']
    #allocation13 [shape = 'u8[131072]{0}', space=vmem, size = 0x20000, scoped, tag = 'input window, operand 15, single buffered']
    #allocation14 [shape = 's32[1]{0}', space=sflag, size = 0x4, scoped, tag = 'scoped memory for policy_net_forward.1']
    %24 = vsyncpa [#allocation3], 0
    %25 = vsyncpa [#allocation5], 0
    %26 = vsyncpa [#allocation8], 0
    %27 = vsyncpa [#allocation11], 0
    %28 = vsyncpa [#allocation14], 0
    // Predicated region
    $region2: #{policy_net_forward.1} parent=1 // pred_check
      _
    $region3: #{policy_net_forward.1} parent=1 // pred_check_branch
      %30 = sbr.rel (0) target = $region5
    $region4: #{policy_net_forward.1} parent=1 // pred_region
      _
    $region5: #{policy_net_forward.1} parent=1 // pred_fallthru
      _
    // Predicated region
    $region6: #{policy_net_forward.1} parent=1 // pred_check
      _
    $region7: #{policy_net_forward.1} parent=1 // pred_check_branch
      %32 = sbr.rel (0) target = $region9
    $region8: #{policy_net_forward.1} parent=1 // pred_region
      _
    $region9: #{policy_net_forward.1} parent=1 // pred_fallthru
      _
    // Predicated region
    $region10: #{policy_net_forward.1} parent=1 // pred_check
      _
    $region11: #{policy_net_forward.1} parent=1 // pred_check_branch
      %34 = sbr.rel (0) target = $region13
    $region12: #{policy_net_forward.1} parent=1 // pred_region
      %s36 = ssub.s32 3072, 3072
      %37 = vsyncadd [#allocation3], %s36
      %s38 = sshll.u32 [#allocation2], 4
      %s39 = int_to_ptr.vmem [resolvable:$true] %s38
      %44 = dma.hbm_to_vmem [thread:$0]  %s2, 3072, %s39, [#allocation3], 128, 128, 8
    $region13: #{policy_net_forward.1} parent=1 // pred_fallthru
      _
    // Predicated region
    $region14: #{policy_net_forward.1} parent=1 // pred_check
      _
    $region15: #{policy_net_forward.1} parent=1 // pred_check_branch
      %46 = sbr.rel (0) target = $region17
    $region16: #{policy_net_forward.1} parent=1 // pred_region
      %s48 = ssub.s32 3072, 3072
      %49 = vsyncadd [#allocation5], %s48
      %s50 = sshll.u32 [#allocation4], 4
      %s51 = int_to_ptr.vmem [resolvable:$true] %s50
      %56 = dma.hbm_to_vmem [thread:$0]  %s3, 3072, %s51, [#allocation5], 128, 128, 8
    $region17: #{policy_net_forward.1} parent=1 // pred_fallthru
      _
    // Predicated region
    $region18: #{policy_net_forward.1} parent=1 // pred_check
      _
    $region19: #{policy_net_forward.1} parent=1 // pred_check_branch
      %58 = sbr.rel (0) target = $region21
    $region20: #{policy_net_forward.1} parent=1 // pred_region
      _
    $region21: #{policy_net_forward.1} parent=1 // pred_fallthru
      _
    // Predicated region
    $region22: #{policy_net_forward.1} parent=1 // pred_check
      _
    $region23: #{policy_net_forward.1} parent=1 // pred_check_branch
      %60 = sbr.rel (0) target = $region25
    $region24: #{policy_net_forward.1} parent=1 // pred_region
      %s62 = ssub.s32 4096, 4096
      %63 = vsyncadd [#allocation5], %s62
      %s64 = sshll.u32 [#allocation6], 4
      %s65 = int_to_ptr.vmem [resolvable:$true] %s64
      %70 = dma.hbm_to_vmem [thread:$0]  %s5, 4096, %s65, [#allocation5], 128, 128, 8
    $region25: #{policy_net_forward.1} parent=1 // pred_fallthru
      _
    // Predicated region
    $region26: #{policy_net_forward.1} parent=1 // pred_check
      _
    $region27: #{policy_net_forward.1} parent=1 // pred_check_branch
      %72 = sbr.rel (0) target = $region29
    $region28: #{policy_net_forward.1} parent=1 // pred_region
      _
    $region29: #{policy_net_forward.1} parent=1 // pred_fallthru
      _
    // Predicated region
    $region30: #{policy_net_forward.1} parent=1 // pred_check
      _
    $region31: #{policy_net_forward.1} parent=1 // pred_check_branch
      %74 = sbr.rel (0) target = $region33
    $region32: #{policy_net_forward.1} parent=1 // pred_region
      %s76 = ssub.s32 4096, 4096
      %77 = vsyncadd [#allocation8], %s76
      %s78 = sshll.u32 [#allocation7], 4
      %s79 = int_to_ptr.vmem [resolvable:$true] %s78
      %84 = dma.hbm_to_vmem [thread:$0]  %s7, 4096, %s79, [#allocation8], 128, 128, 8
    $region33: #{policy_net_forward.1} parent=1 // pred_fallthru
      _
    // Predicated region
    $region34: #{policy_net_forward.1} parent=1 // pred_check
      _
    $region35: #{policy_net_forward.1} parent=1 // pred_check_branch
      %86 = sbr.rel (0) target = $region37
    $region36: #{policy_net_forward.1} parent=1 // pred_region
      _
    $region37: #{policy_net_forward.1} parent=1 // pred_fallthru
      _
    // Predicated region
    $region38: #{policy_net_forward.1} parent=1 // pred_check
      _
    $region39: #{policy_net_forward.1} parent=1 // pred_check_branch
      %88 = sbr.rel (0) target = $region41
    $region40: #{policy_net_forward.1} parent=1 // pred_region
      %s90 = ssub.s32 4096, 4096
      %91 = vsyncadd [#allocation8], %s90
      %s92 = sshll.u32 [#allocation9], 4
      %s93 = int_to_ptr.vmem [resolvable:$true] %s92
      %98 = dma.hbm_to_vmem [thread:$0]  %s9, 4096, %s93, [#allocation8], 128, 128, 8
    $region41: #{policy_net_forward.1} parent=1 // pred_fallthru
      _
    // Predicated region
    $region42: #{policy_net_forward.1} parent=1 // pred_check
      _
    $region43: #{policy_net_forward.1} parent=1 // pred_check_branch
      %100 = sbr.rel (0) target = $region45
    $region44: #{policy_net_forward.1} parent=1 // pred_region
      _
    $region45: #{policy_net_forward.1} parent=1 // pred_fallthru
      _
    // Predicated region
    $region46: #{policy_net_forward.1} parent=1 // pred_check
      _
    $region47: #{policy_net_forward.1} parent=1 // pred_check_branch
      %102 = sbr.rel (0) target = $region49
    $region48: #{policy_net_forward.1} parent=1 // pred_region
      %s104 = ssub.s32 4096, 4096
      %105 = vsyncadd [#allocation11], %s104
      %s106 = sshll.u32 [#allocation10], 4
      %s107 = int_to_ptr.vmem [resolvable:$true] %s106
      %112 = dma.hbm_to_vmem [thread:$0]  %s11, 4096, %s107, [#allocation11], 128, 128, 8
    $region49: #{policy_net_forward.1} parent=1 // pred_fallthru
      _
    // Predicated region
    $region50: #{policy_net_forward.1} parent=1 // pred_check
      _
    $region51: #{policy_net_forward.1} parent=1 // pred_check_branch
      %114 = sbr.rel (0) target = $region53
    $region52: #{policy_net_forward.1} parent=1 // pred_region
      _
    $region53: #{policy_net_forward.1} parent=1 // pred_fallthru
      _
    // Predicated region
    $region54: #{policy_net_forward.1} parent=1 // pred_check
      _
    $region55: #{policy_net_forward.1} parent=1 // pred_check_branch
      %116 = sbr.rel (0) target = $region57
    $region56: #{policy_net_forward.1} parent=1 // pred_region
      %s118 = ssub.s32 4096, 4096
      %119 = vsyncadd [#allocation11], %s118
      %s120 = sshll.u32 [#allocation12], 4
      %s121 = int_to_ptr.vmem [resolvable:$true] %s120
      %126 = dma.hbm_to_vmem [thread:$0]  %s13, 4096, %s121, [#allocation11], 128, 128, 8
    $region57: #{policy_net_forward.1} parent=1 // pred_fallthru
      _
    // Predicated region
    $region58: #{policy_net_forward.1} parent=1 // pred_check
      _
    $region59: #{policy_net_forward.1} parent=1 // pred_check_branch
      %128 = sbr.rel (0) target = $region61
    $region60: #{policy_net_forward.1} parent=1 // pred_region
      _
    $region61: #{policy_net_forward.1} parent=1 // pred_fallthru
      _
    // Predicated region
    $region62: #{policy_net_forward.1} parent=1 // pred_check
      _
    $region63: #{policy_net_forward.1} parent=1 // pred_check_branch
      %130 = sbr.rel (0) target = $region65
    $region64: #{policy_net_forward.1} parent=1 // pred_region
      %s132 = ssub.s32 4096, 4096
      %133 = vsyncadd [#allocation14], %s132
      %s134 = sshll.u32 [#allocation13], 4
      %s135 = int_to_ptr.vmem [resolvable:$true] %s134
      %140 = dma.hbm_to_vmem [thread:$0]  %s15, 4096, %s135, [#allocation14], 128, 128, 8
    $region65: #{policy_net_forward.1} parent=1 // pred_fallthru
      _
    // Predicated region
    $region66: #{policy_net_forward.1} parent=1 // pred_check
      _
    $region67: #{policy_net_forward.1} parent=1 // pred_check_branch
      %142 = sbr.rel (0) target = $region69
    $region68: #{policy_net_forward.1} parent=1 // pred_region
      _
    $region69: #{policy_net_forward.1} parent=1 // pred_fallthru
      _
    // Predicated region
    $region70: #{policy_net_forward.1} parent=1 // pred_check
      _
    $region71: #{policy_net_forward.1} parent=1 // pred_check_branch
      %144 = sbr.rel (0) target = $region73
    $region72: #{policy_net_forward.1} parent=1 // pred_region
      %145 = dma.done [#allocation3], 3072
    $region73: #{policy_net_forward.1} parent=1 // pred_fallthru
      _
    // Predicated region
    $region74: #{policy_net_forward.1} parent=1 // pred_check
      _
    $region75: #{policy_net_forward.1} parent=1 // pred_check_branch
      %147 = sbr.rel (0) target = $region77
    $region76: #{policy_net_forward.1} parent=1 // pred_region
      %148 = dma.done [#allocation5], 3072
    $region77: #{policy_net_forward.1} parent=1 // pred_fallthru
      _
    // Predicated region
    $region78: #{policy_net_forward.1} parent=1 // pred_check
      _
    $region79: #{policy_net_forward.1} parent=1 // pred_check_branch
      %150 = sbr.rel (0) target = $region81
    $region80: #{policy_net_forward.1} parent=1 // pred_region
      %151 = dma.done [#allocation5], 4096
    $region81: #{policy_net_forward.1} parent=1 // pred_fallthru
      _
    // Predicated region
    $region82: #{policy_net_forward.1} parent=1 // pred_check
      _
    $region83: #{policy_net_forward.1} parent=1 // pred_check_branch
      %153 = sbr.rel (0) target = $region85
    $region84: #{policy_net_forward.1} parent=1 // pred_region
      %154 = dma.done [#allocation8], 4096
    $region85: #{policy_net_forward.1} parent=1 // pred_fallthru
      _
    // Predicated region
    $region86: #{policy_net_forward.1} parent=1 // pred_check
      _
    $region87: #{policy_net_forward.1} parent=1 // pred_check_branch
      %156 = sbr.rel (0) target = $region89
    $region88: #{policy_net_forward.1} parent=1 // pred_region
      %157 = dma.done [#allocation8], 4096
    $region89: #{policy_net_forward.1} parent=1 // pred_fallthru
      _
    // Predicated region
    $region90: #{policy_net_forward.1} parent=1 // pred_check
      _
    $region91: #{policy_net_forward.1} parent=1 // pred_check_branch
      %159 = sbr.rel (0) target = $region93
    $region92: #{policy_net_forward.1} parent=1 // pred_region
      %160 = dma.done [#allocation11], 4096
    $region93: #{policy_net_forward.1} parent=1 // pred_fallthru
      _
    // Predicated region
    $region94: #{policy_net_forward.1} parent=1 // pred_check
      _
    $region95: #{policy_net_forward.1} parent=1 // pred_check_branch
      %162 = sbr.rel (0) target = $region97
    $region96: #{policy_net_forward.1} parent=1 // pred_region
      %163 = dma.done [#allocation11], 4096
    $region97: #{policy_net_forward.1} parent=1 // pred_fallthru
      _
    // Predicated region
    $region98: #{policy_net_forward.1} parent=1 // pred_check
      _
    $region99: #{policy_net_forward.1} parent=1 // pred_check_branch
      %165 = sbr.rel (0) target = $region101
    $region100: #{policy_net_forward.1} parent=1 // pred_region
      %166 = dma.done [#allocation14], 4096
    $region101: #{policy_net_forward.1} parent=1 // pred_fallthru
      _
    %v168 = vld [vmem:[%s0] sm:$0x3]
    %v169 = vld [vmem:[%s1] sm:$0x3]
    %v170 = vld [vmem:[#allocation2] sm:$0xff]
    %v171 = vld [vmem:[#allocation2 + $0x8] sm:$0xff]
    %v172 = vld [vmem:[#allocation2 + $0x10] sm:$0xff]
    %v173 = vld [vmem:[#allocation2 + $0x18] sm:$0xff]
    %v174 = vld [vmem:[#allocation2 + $0x20] sm:$0xff]
    %v175 = vld [vmem:[#allocation2 + $0x28] sm:$0xff]
    %v176 = vld [vmem:[#allocation2 + $0x30] sm:$0xff]
    %v177 = vld [vmem:[#allocation2 + $0x38] sm:$0xff]
    %v178 = vld [vmem:[#allocation2 + $0x40] sm:$0xff]
    %v179 = vld [vmem:[#allocation2 + $0x48] sm:$0xff]
    %v180 = vld [vmem:[#allocation2 + $0x50] sm:$0xff]
    %v181 = vld [vmem:[#allocation2 + $0x58] sm:$0xff]
    %v182 = vld [vmem:[#allocation2 + $0x60] sm:$0xff]
    %v183 = vld [vmem:[#allocation2 + $0x68] sm:$0xff]
    %v184 = vld [vmem:[#allocation2 + $0x70] sm:$0xff]
    %v185 = vld [vmem:[#allocation2 + $0x78] sm:$0xff]
    %v186 = vld [vmem:[#allocation2 + $0x80] sm:$0xff]
    %v187 = vld [vmem:[#allocation2 + $0x88] sm:$0xff]
    %v188 = vld [vmem:[#allocation2 + $0x90] sm:$0xff]
    %v189 = vld [vmem:[#allocation2 + $0x98] sm:$0xff]
    %v190 = vld [vmem:[#allocation2 + $0xa0] sm:$0xff]
    %v191 = vld [vmem:[#allocation2 + $0xa8] sm:$0xff]
    %v192 = vld [vmem:[#allocation2 + $0xb0] sm:$0xff]
    %v193 = vld [vmem:[#allocation2 + $0xb8] sm:$0x33]
    %v194 = vld [vmem:[#allocation4] sm:$0xff]
    %v195 = vld [vmem:[#allocation4 + $0x8] sm:$0xff]
    %v196 = vld [vmem:[#allocation4 + $0x10] sm:$0xff]
    %v197 = vld [vmem:[#allocation4 + $0x18] sm:$0xff]
    %v198 = vld [vmem:[#allocation4 + $0x20] sm:$0xff]
    %v199 = vld [vmem:[#allocation4 + $0x28] sm:$0xff]
    %v200 = vld [vmem:[#allocation4 + $0x30] sm:$0xff]
    %v201 = vld [vmem:[#allocation4 + $0x38] sm:$0xff]
    %v202 = vld [vmem:[#allocation4 + $0x40] sm:$0xff]
    %v203 = vld [vmem:[#allocation4 + $0x48] sm:$0xff]
    %v204 = vld [vmem:[#allocation4 + $0x50] sm:$0xff]
    %v205 = vld [vmem:[#allocation4 + $0x58] sm:$0xff]
    %v206 = vld [vmem:[#allocation4 + $0x60] sm:$0xff]
    %v207 = vld [vmem:[#allocation4 + $0x68] sm:$0xff]
    %v208 = vld [vmem:[#allocation4 + $0x70] sm:$0xff]
    %v209 = vld [vmem:[#allocation4 + $0x78] sm:$0xff]
    %v210 = vld [vmem:[#allocation4 + $0x80] sm:$0xff]
    %v211 = vld [vmem:[#allocation4 + $0x88] sm:$0xff]
    %v212 = vld [vmem:[#allocation4 + $0x90] sm:$0xff]
    %v213 = vld [vmem:[#allocation4 + $0x98] sm:$0xff]
    %v214 = vld [vmem:[#allocation4 + $0xa0] sm:$0xff]
    %v215 = vld [vmem:[#allocation4 + $0xa8] sm:$0xff]
    %v216 = vld [vmem:[#allocation4 + $0xb0] sm:$0xff]
    %v217 = vld [vmem:[#allocation4 + $0xb8] sm:$0x33]
    %v220 = vunpack.c.l.s4 1966171168
    %v221 = vunpack.c.0.s8 %v220
    %v222 = vlaneseq
    %v223 = vshrl.u32 %v222, 7
    %v224 = vsub.s32 %v221, %v223
    %v225 = vrot.slane %v169, %v224
    %v226 = vcombine.high %v225, %v225
    %v228 = vunpack.c.l.s4 1966171168
    %v229 = vunpack.c.0.s8 %v228
    %v230 = vlaneseq
    %v231 = vshrl.u32 %v230, 7
    %v232 = vsub.s32 %v229, %v231
    %v233 = vrot.slane %v225, %v232
    %v235 = vunpack.c.l.s4 1966171168
    %v236 = vunpack.c.0.s8 %v235
    %v237 = vlaneseq
    %v238 = vshrl.u32 %v237, 7
    %v239 = vsub.s32 %v236, %v238
    %v240 = vrot.slane %v226, %v239
    %v266 = vunpack.c.l.b16 %v194
    %v267 = vunpack.c.h.b16 %v194
    %v268 = vunpack.c.l.b16 %v195
    %v269 = vunpack.c.h.b16 %v195
    %v270 = vunpack.c.l.b16 %v196
    %v271 = vunpack.c.h.b16 %v196
    %v272 = vunpack.c.l.b16 %v197
    %v273 = vunpack.c.h.b16 %v197
    %v274 = vunpack.c.l.b16 %v198
    %v275 = vunpack.c.h.b16 %v198
    %v276 = vunpack.c.l.b16 %v199
    %v277 = vunpack.c.h.b16 %v199
    %v278 = vunpack.c.l.b16 %v200
    %v279 = vunpack.c.h.b16 %v200
    %v280 = vunpack.c.l.b16 %v201
    %v281 = vunpack.c.h.b16 %v201
    %v282 = vunpack.c.l.b16 %v202
    %v283 = vunpack.c.h.b16 %v202
    %v284 = vunpack.c.l.b16 %v203
    %v285 = vunpack.c.h.b16 %v203
    %v286 = vunpack.c.l.b16 %v204
    %v287 = vunpack.c.h.b16 %v204
    %v288 = vunpack.c.l.b16 %v205
    %v289 = vunpack.c.h.b16 %v205
    %v290 = vunpack.c.l.b16 %v206
    %v291 = vunpack.c.h.b16 %v206
    %v292 = vunpack.c.l.b16 %v207
    %v293 = vunpack.c.h.b16 %v207
    %v294 = vunpack.c.l.b16 %v208
    %v295 = vunpack.c.h.b16 %v208
    %v296 = vunpack.c.l.b16 %v209
    %v297 = vunpack.c.h.b16 %v209
    %v298 = vunpack.c.l.b16 %v210
    %v299 = vunpack.c.h.b16 %v210
    %v300 = vunpack.c.l.b16 %v211
    %v301 = vunpack.c.h.b16 %v211
    %v302 = vunpack.c.l.b16 %v212
    %v303 = vunpack.c.h.b16 %v212
    %v304 = vunpack.c.l.b16 %v213
    %v305 = vunpack.c.h.b16 %v213
    %v306 = vunpack.c.l.b16 %v214
    %v307 = vunpack.c.h.b16 %v214
    %v308 = vunpack.c.l.b16 %v215
    %v309 = vunpack.c.h.b16 %v215
    %v310 = vunpack.c.l.b16 %v216
    %v311 = vunpack.c.h.b16 %v216
    %v312 = vunpack.c.l.b16 %v217
    %v313 = vunpack.c.h.b16 %v217
    %v314 = vpack.c.b16 %v268, %v266
    %v315 = vpack.c.b16 %v269, %v267
    %v316 = vpack.c.b16 %v272, %v270
    %v317 = vpack.c.b16 %v273, %v271
    %v318 = vpack.c.b16 %v276, %v274
    %v319 = vpack.c.b16 %v277, %v275
    %v320 = vpack.c.b16 %v280, %v278
    %v321 = vpack.c.b16 %v281, %v279
    %v322 = vpack.c.b16 %v284, %v282
    %v323 = vpack.c.b16 %v285, %v283
    %v324 = vpack.c.b16 %v288, %v286
    %v325 = vpack.c.b16 %v289, %v287
    %v326 = vpack.c.b16 %v292, %v290
    %v327 = vpack.c.b16 %v293, %v291
    %v328 = vpack.c.b16 %v296, %v294
    %v329 = vpack.c.b16 %v297, %v295
    %v330 = vpack.c.b16 %v300, %v298
    %v331 = vpack.c.b16 %v301, %v299
    %v332 = vpack.c.b16 %v304, %v302
    %v333 = vpack.c.b16 %v305, %v303
    %v334 = vpack.c.b16 %v308, %v306
    %v335 = vpack.c.b16 %v309, %v307
    %v336 = vpack.c.b16 %v312, %v310
    %v337 = vpack.c.b16 %v313, %v311
    %vm360 = vcmask 482304
    %v362 = vsel %vm360, %v240, 0
    %vm364 = vcmask 1044480
    %vm365 = vcmask 1045504
    %v366 = vsel %vm364, 4294967295, 65535
    %v367 = vsel %vm365, %v366, 0
    %v369 = vand.u32 %v336, %v367
    %v372 = vand.u32 %v337, %v367
    %374 = vmatprep.subr.bf16.mxu0 %v315
    %375 = vmatpush1.bf16.msra.mxu0 %v314
    %376 = vmatprep.subr.bf16.mxu0 %v317
    %377 = vmatpush1.bf16.msra.mxu0 %v316
    %378 = vmatprep.subr.bf16.mxu0 %v319
    %379 = vmatpush1.bf16.msra.mxu0 %v318
    %380 = vmatprep.subr.bf16.mxu0 %v321
    %381 = vmatpush1.bf16.msra.mxu0 %v320
    %382 = vmatprep.subr.bf16.mxu0 %v323
    %383 = vmatpush1.bf16.msra.mxu0 %v322
    %384 = vmatprep.subr.bf16.mxu0 %v325
    %385 = vmatpush1.bf16.msra.mxu0 %v324
    %386 = vmatprep.subr.bf16.mxu0 %v327
    %387 = vmatpush1.bf16.msra.mxu0 %v326
    %388 = vmatprep.subr.bf16.mxu0 %v329
    %389 = vmatpush1.bf16.msra.mxu0 %v328
    %390 = vmatprep.subr.bf16.mxu0 %v331
    %391 = vmatpush1.bf16.msra.mxu0 %v330
    %392 = vmatprep.subr.bf16.mxu0 %v333
    %393 = vmatpush1.bf16.msra.mxu0 %v332
    %394 = vmatprep.subr.bf16.mxu0 %v335
    %395 = vmatpush1.bf16.msra.mxu0 %v334
    %396 = vmatprep.subr.bf16.mxu0 %v372
    %397 = vmatpush1.bf16.msra.mxu0 %v369
    %398 = vmatprep.subr.bf16.mxu0 0
    %399 = vmatpush1.bf16.msra.mxu0 0
    %400 = vmatprep.subr.bf16.mxu0 0
    %401 = vmatpush1.bf16.msra.mxu0 0
    %402 = vmatprep.subr.bf16.mxu0 0
    %403 = vmatpush1.bf16.msra.mxu0 0
    %404 = vmatprep.subr.bf16.mxu0 0
    %405 = vmatpush1.bf16.msra.mxu0 0
    %406 = vmatprep.mubr.bf16.mxu0 %v362
    %407 = vmatmul.mubr.bf16.gmra.mrb[0].mxu0 %v233
    %v408 = vpop.f32.mrb[0].mxu0
    %v409 = vadd.f32 0.0, %v408
    %v410 = vpop.f32.mrb[0].mxu0
    %v411 = vadd.f32 0.0, %v410
    %v412 = vpop.f32.mrb[0].mxu0
    %v413 = vpop.f32.mrb[0].mxu0
    %414 = vdwg.mxu0
    %v417 = vunpack.c.l.s4 1966171168
    %v418 = vunpack.c.0.s8 %v417
    %v419 = vlaneseq
    %v420 = vshrl.u32 %v419, 7
    %v421 = vsub.s32 %v418, %v420
    %v422 = vrot.slane %v168, %v421
    %v423 = vcombine.high %v422, %v422
    %v425 = vunpack.c.l.s4 1966171168
    %v426 = vunpack.c.0.s8 %v425
    %v427 = vlaneseq
    %v428 = vshrl.u32 %v427, 7
    %v429 = vsub.s32 %v426, %v428
    %v430 = vrot.slane %v422, %v429
    %v432 = vunpack.c.l.s4 1966171168
    %v433 = vunpack.c.0.s8 %v432
    %v434 = vlaneseq
    %v435 = vshrl.u32 %v434, 7
    %v436 = vsub.s32 %v433, %v435
    %v437 = vrot.slane %v423, %v436
    %v463 = vunpack.c.l.b16 %v170
    %v464 = vunpack.c.h.b16 %v170
    %v465 = vunpack.c.l.b16 %v171
    %v466 = vunpack.c.h.b16 %v171
    %v467 = vunpack.c.l.b16 %v172
    %v468 = vunpack.c.h.b16 %v172
    %v469 = vunpack.c.l.b16 %v173
    %v470 = vunpack.c.h.b16 %v173
    %v471 = vunpack.c.l.b16 %v174
    %v472 = vunpack.c.h.b16 %v174
    %v473 = vunpack.c.l.b16 %v175
    %v474 = vunpack.c.h.b16 %v175
    %v475 = vunpack.c.l.b16 %v176
    %v476 = vunpack.c.h.b16 %v176
    %v477 = vunpack.c.l.b16 %v177
    %v478 = vunpack.c.h.b16 %v177
    %v479 = vunpack.c.l.b16 %v178
    %v480 = vunpack.c.h.b16 %v178
    %v481 = vunpack.c.l.b16 %v179
    %v482 = vunpack.c.h.b16 %v179
    %v483 = vunpack.c.l.b16 %v180
    %v484 = vunpack.c.h.b16 %v180
    %v485 = vunpack.c.l.b16 %v181
    %v486 = vunpack.c.h.b16 %v181
    %v487 = vunpack.c.l.b16 %v182
    %v488 = vunpack.c.h.b16 %v182
    %v489 = vunpack.c.l.b16 %v183
    %v490 = vunpack.c.h.b16 %v183
    %v491 = vunpack.c.l.b16 %v184
    %v492 = vunpack.c.h.b16 %v184
    %v493 = vunpack.c.l.b16 %v185
    %v494 = vunpack.c.h.b16 %v185
    %v495 = vunpack.c.l.b16 %v186
    %v496 = vunpack.c.h.b16 %v186
    %v497 = vunpack.c.l.b16 %v187
    %v498 = vunpack.c.h.b16 %v187
    %v499 = vunpack.c.l.b16 %v188
    %v500 = vunpack.c.h.b16 %v188
    %v501 = vunpack.c.l.b16 %v189
    %v502 = vunpack.c.h.b16 %v189
    %v503 = vunpack.c.l.b16 %v190
    %v504 = vunpack.c.h.b16 %v190
    %v505 = vunpack.c.l.b16 %v191
    %v506 = vunpack.c.h.b16 %v191
    %v507 = vunpack.c.l.b16 %v192
    %v508 = vunpack.c.h.b16 %v192
    %v509 = vunpack.c.l.b16 %v193
    %v510 = vunpack.c.h.b16 %v193
    %v511 = vpack.c.b16 %v465, %v463
    %v512 = vpack.c.b16 %v466, %v464
    %v513 = vpack.c.b16 %v469, %v467
    %v514 = vpack.c.b16 %v470, %v468
    %v515 = vpack.c.b16 %v473, %v471
    %v516 = vpack.c.b16 %v474, %v472
    %v517 = vpack.c.b16 %v477, %v475
    %v518 = vpack.c.b16 %v478, %v476
    %v519 = vpack.c.b16 %v481, %v479
    %v520 = vpack.c.b16 %v482, %v480
    %v521 = vpack.c.b16 %v485, %v483
    %v522 = vpack.c.b16 %v486, %v484
    %v523 = vpack.c.b16 %v489, %v487
    %v524 = vpack.c.b16 %v490, %v488
    %v525 = vpack.c.b16 %v493, %v491
    %v526 = vpack.c.b16 %v494, %v492
    %v527 = vpack.c.b16 %v497, %v495
    %v528 = vpack.c.b16 %v498, %v496
    %v529 = vpack.c.b16 %v501, %v499
    %v530 = vpack.c.b16 %v502, %v500
    %v531 = vpack.c.b16 %v505, %v503
    %v532 = vpack.c.b16 %v506, %v504
    %v533 = vpack.c.b16 %v509, %v507
    %v534 = vpack.c.b16 %v510, %v508
    %v558 = vsel %vm360, %v437, 0
    %v561 = vand.u32 %v533, %v367
    %v564 = vand.u32 %v534, %v367
    %566 = vmatprep.subr.bf16.mxu0 %v512
    %567 = vmatpush1.bf16.msra.mxu0 %v511
    %568 = vmatprep.subr.bf16.mxu0 %v514
    %569 = vmatpush1.bf16.msra.mxu0 %v513
    %570 = vmatprep.subr.bf16.mxu0 %v516
    %571 = vmatpush1.bf16.msra.mxu0 %v515
    %572 = vmatprep.subr.bf16.mxu0 %v518
    %573 = vmatpush1.bf16.msra.mxu0 %v517
    %574 = vmatprep.subr.bf16.mxu0 %v520
    %575 = vmatpush1.bf16.msra.mxu0 %v519
    %576 = vmatprep.subr.bf16.mxu0 %v522
    %577 = vmatpush1.bf16.msra.mxu0 %v521
    %578 = vmatprep.subr.bf16.mxu0 %v524
    %579 = vmatpush1.bf16.msra.mxu0 %v523
    %580 = vmatprep.subr.bf16.mxu0 %v526
    %581 = vmatpush1.bf16.msra.mxu0 %v525
    %582 = vmatprep.subr.bf16.mxu0 %v528
    %583 = vmatpush1.bf16.msra.mxu0 %v527
    %584 = vmatprep.subr.bf16.mxu0 %v530
    %585 = vmatpush1.bf16.msra.mxu0 %v529
    %586 = vmatprep.subr.bf16.mxu0 %v532
    %587 = vmatpush1.bf16.msra.mxu0 %v531
    %588 = vmatprep.subr.bf16.mxu0 %v564
    %589 = vmatpush1.bf16.msra.mxu0 %v561
    %590 = vmatprep.subr.bf16.mxu0 0
    %591 = vmatpush1.bf16.msra.mxu0 0
    %592 = vmatprep.subr.bf16.mxu0 0
    %593 = vmatpush1.bf16.msra.mxu0 0
    %594 = vmatprep.subr.bf16.mxu0 0
    %595 = vmatpush1.bf16.msra.mxu0 0
    %596 = vmatprep.subr.bf16.mxu0 0
    %597 = vmatpush1.bf16.msra.mxu0 0
    %598 = vmatprep.mubr.bf16.mxu0 %v558
    %599 = vmatmul.mubr.bf16.gmra.mrb[0].mxu0 %v430
    %v600 = vpop.f32.mrb[0].mxu0
    %v601 = vadd.f32 %v409, %v600
    %v602 = vpop.f32.mrb[0].mxu0
    %v603 = vadd.f32 %v411, %v602
    %v604 = vpop.f32.mrb[0].mxu0
    %v605 = vpop.f32.mrb[0].mxu0
    %606 = vdwg.mxu0
    %v607 = vld [vmem:[%s4] sm:$0x3]
    %v609 = vlaneseq
    %v610 = vshrl.u32 %v609, 7
    %v611 = vsub.s32 0, %v610
    %v612 = vrot.slane %v607, %v611
    %v613 = vlaneseq
    %v614 = vshrl.u32 %v613, 7
    %v615 = vsub.s32 1, %v614
    %v616 = vrot.slane %v607, %v615
    %v619 = vadd.f32 %v601, %v612
    %v620 = vadd.f32 %v603, %v616
    %v621 = vmul.f32 %v619, 0.01
    %v622 = vmul.f32 %v620, 0.01
    %v623 = vmax.f32 %v619, %v621
    %v624 = vmax.f32 %v620, %v622
    %v625 = vpack.c.bf16 %v623, %v623
    %v626 = vpack.c.bf16 %v624, %v624
    %v627 = vld [vmem:[#allocation6] sm:$0xff]
    %v628 = vld [vmem:[#allocation6 + $0x8] sm:$0xff]
    %v629 = vld [vmem:[#allocation6 + $0x10] sm:$0xff]
    %v630 = vld [vmem:[#allocation6 + $0x18] sm:$0xff]
    %v631 = vld [vmem:[#allocation6 + $0x20] sm:$0xff]
    %v632 = vld [vmem:[#allocation6 + $0x28] sm:$0xff]
    %v633 = vld [vmem:[#allocation6 + $0x30] sm:$0xff]
    %v634 = vld [vmem:[#allocation6 + $0x38] sm:$0xff]
    %v635 = vld [vmem:[#allocation6 + $0x40] sm:$0xff]
    %v636 = vld [vmem:[#allocation6 + $0x48] sm:$0xff]
    %v637 = vld [vmem:[#allocation6 + $0x50] sm:$0xff]
    %v638 = vld [vmem:[#allocation6 + $0x58] sm:$0xff]
    %v639 = vld [vmem:[#allocation6 + $0x60] sm:$0xff]
    %v640 = vld [vmem:[#allocation6 + $0x68] sm:$0xff]
    %v641 = vld [vmem:[#allocation6 + $0x70] sm:$0xff]
    %v642 = vld [vmem:[#allocation6 + $0x78] sm:$0xff]
    %v643 = vld [vmem:[#allocation6 + $0x80] sm:$0xff]
    %v644 = vld [vmem:[#allocation6 + $0x88] sm:$0xff]
    %v645 = vld [vmem:[#allocation6 + $0x90] sm:$0xff]
    %v646 = vld [vmem:[#allocation6 + $0x98] sm:$0xff]
    %v647 = vld [vmem:[#allocation6 + $0xa0] sm:$0xff]
    %v648 = vld [vmem:[#allocation6 + $0xa8] sm:$0xff]
    %v649 = vld [vmem:[#allocation6 + $0xb0] sm:$0xff]
    %v650 = vld [vmem:[#allocation6 + $0xb8] sm:$0xff]
    %v651 = vld [vmem:[#allocation6 + $0xc0] sm:$0xff]
    %v652 = vld [vmem:[#allocation6 + $0xc8] sm:$0xff]
    %v653 = vld [vmem:[#allocation6 + $0xd0] sm:$0xff]
    %v654 = vld [vmem:[#allocation6 + $0xd8] sm:$0xff]
    %v655 = vld [vmem:[#allocation6 + $0xe0] sm:$0xff]
    %v656 = vld [vmem:[#allocation6 + $0xe8] sm:$0xff]
    %v657 = vld [vmem:[#allocation6 + $0xf0] sm:$0xff]
    %v658 = vld [vmem:[#allocation6 + $0xf8] sm:$0xff]
    %v659 = vld [vmem:[%s6] sm:$0x3]
    %v661 = vlaneseq
    %v662 = vshrl.u32 %v661, 7
    %v663 = vsub.s32 0, %v662
    %v664 = vrot.slane %v659, %v663
    %v665 = vlaneseq
    %v666 = vshrl.u32 %v665, 7
    %v667 = vsub.s32 1, %v666
    %v668 = vrot.slane %v659, %v667
    %v703 = vunpack.c.l.b16 %v627
    %v704 = vunpack.c.h.b16 %v627
    %v705 = vunpack.c.l.b16 %v628
    %v706 = vunpack.c.h.b16 %v628
    %v707 = vunpack.c.l.b16 %v629
    %v708 = vunpack.c.h.b16 %v629
    %v709 = vunpack.c.l.b16 %v630
    %v710 = vunpack.c.h.b16 %v630
    %v711 = vunpack.c.l.b16 %v631
    %v712 = vunpack.c.h.b16 %v631
    %v713 = vunpack.c.l.b16 %v632
    %v714 = vunpack.c.h.b16 %v632
    %v715 = vunpack.c.l.b16 %v633
    %v716 = vunpack.c.h.b16 %v633
    %v717 = vunpack.c.l.b16 %v634
    %v718 = vunpack.c.h.b16 %v634
    %v719 = vunpack.c.l.b16 %v635
    %v720 = vunpack.c.h.b16 %v635
    %v721 = vunpack.c.l.b16 %v636
    %v722 = vunpack.c.h.b16 %v636
    %v723 = vunpack.c.l.b16 %v637
    %v724 = vunpack.c.h.b16 %v637
    %v725 = vunpack.c.l.b16 %v638
    %v726 = vunpack.c.h.b16 %v638
    %v727 = vunpack.c.l.b16 %v639
    %v728 = vunpack.c.h.b16 %v639
    %v729 = vunpack.c.l.b16 %v640
    %v730 = vunpack.c.h.b16 %v640
    %v731 = vunpack.c.l.b16 %v641
    %v732 = vunpack.c.h.b16 %v641
    %v733 = vunpack.c.l.b16 %v642
    %v734 = vunpack.c.h.b16 %v642
    %v735 = vunpack.c.l.b16 %v643
    %v736 = vunpack.c.h.b16 %v643
    %v737 = vunpack.c.l.b16 %v644
    %v738 = vunpack.c.h.b16 %v644
    %v739 = vunpack.c.l.b16 %v645
    %v740 = vunpack.c.h.b16 %v645
    %v741 = vunpack.c.l.b16 %v646
    %v742 = vunpack.c.h.b16 %v646
    %v743 = vunpack.c.l.b16 %v647
    %v744 = vunpack.c.h.b16 %v647
    %v745 = vunpack.c.l.b16 %v648
    %v746 = vunpack.c.h.b16 %v648
    %v747 = vunpack.c.l.b16 %v649
    %v748 = vunpack.c.h.b16 %v649
    %v749 = vunpack.c.l.b16 %v650
    %v750 = vunpack.c.h.b16 %v650
    %v751 = vunpack.c.l.b16 %v651
    %v752 = vunpack.c.h.b16 %v651
    %v753 = vunpack.c.l.b16 %v652
    %v754 = vunpack.c.h.b16 %v652
    %v755 = vunpack.c.l.b16 %v653
    %v756 = vunpack.c.h.b16 %v653
    %v757 = vunpack.c.l.b16 %v654
    %v758 = vunpack.c.h.b16 %v654
    %v759 = vunpack.c.l.b16 %v655
    %v760 = vunpack.c.h.b16 %v655
    %v761 = vunpack.c.l.b16 %v656
    %v762 = vunpack.c.h.b16 %v656
    %v763 = vunpack.c.l.b16 %v657
    %v764 = vunpack.c.h.b16 %v657
    %v765 = vunpack.c.l.b16 %v658
    %v766 = vunpack.c.h.b16 %v658
    %v767 = vpack.c.b16 %v705, %v703
    %v768 = vpack.c.b16 %v706, %v704
    %v769 = vpack.c.b16 %v709, %v707
    %v770 = vpack.c.b16 %v710, %v708
    %v771 = vpack.c.b16 %v713, %v711
    %v772 = vpack.c.b16 %v714, %v712
    %v773 = vpack.c.b16 %v717, %v715
    %v774 = vpack.c.b16 %v718, %v716
    %v775 = vpack.c.b16 %v721, %v719
    %v776 = vpack.c.b16 %v722, %v720
    %v777 = vpack.c.b16 %v725, %v723
    %v778 = vpack.c.b16 %v726, %v724
    %v779 = vpack.c.b16 %v729, %v727
    %v780 = vpack.c.b16 %v730, %v728
    %v781 = vpack.c.b16 %v733, %v731
    %v782 = vpack.c.b16 %v734, %v732
    %v783 = vpack.c.b16 %v737, %v735
    %v784 = vpack.c.b16 %v738, %v736
    %v785 = vpack.c.b16 %v741, %v739
    %v786 = vpack.c.b16 %v742, %v740
    %v787 = vpack.c.b16 %v745, %v743
    %v788 = vpack.c.b16 %v746, %v744
    %v789 = vpack.c.b16 %v749, %v747
    %v790 = vpack.c.b16 %v750, %v748
    %v791 = vpack.c.b16 %v753, %v751
    %v792 = vpack.c.b16 %v754, %v752
    %v793 = vpack.c.b16 %v757, %v755
    %v794 = vpack.c.b16 %v758, %v756
    %v795 = vpack.c.b16 %v761, %v759
    %v796 = vpack.c.b16 %v762, %v760
    %v797 = vpack.c.b16 %v765, %v763
    %v798 = vpack.c.b16 %v766, %v764
    %831 = vmatprep.subr.bf16.mxu0 %v768
    %832 = vmatpush1.bf16.msra.mxu0 %v767
    %833 = vmatprep.subr.bf16.mxu0 %v770
    %834 = vmatpush1.bf16.msra.mxu0 %v769
    %835 = vmatprep.subr.bf16.mxu0 %v772
    %836 = vmatpush1.bf16.msra.mxu0 %v771
    %837 = vmatprep.subr.bf16.mxu0 %v774
    %838 = vmatpush1.bf16.msra.mxu0 %v773
    %839 = vmatprep.subr.bf16.mxu0 %v776
    %840 = vmatpush1.bf16.msra.mxu0 %v775
    %841 = vmatprep.subr.bf16.mxu0 %v778
    %842 = vmatpush1.bf16.msra.mxu0 %v777
    %843 = vmatprep.subr.bf16.mxu0 %v780
    %844 = vmatpush1.bf16.msra.mxu0 %v779
    %845 = vmatprep.subr.bf16.mxu0 %v782
    %846 = vmatpush1.bf16.msra.mxu0 %v781
    %847 = vmatprep.subr.bf16.mxu0 %v784
    %848 = vmatpush1.bf16.msra.mxu0 %v783
    %849 = vmatprep.subr.bf16.mxu0 %v786
    %850 = vmatpush1.bf16.msra.mxu0 %v785
    %851 = vmatprep.subr.bf16.mxu0 %v788
    %852 = vmatpush1.bf16.msra.mxu0 %v787
    %853 = vmatprep.subr.bf16.mxu0 %v790
    %854 = vmatpush1.bf16.msra.mxu0 %v789
    %855 = vmatprep.subr.bf16.mxu0 %v792
    %856 = vmatpush1.bf16.msra.mxu0 %v791
    %857 = vmatprep.subr.bf16.mxu0 %v794
    %858 = vmatpush1.bf16.msra.mxu0 %v793
    %859 = vmatprep.subr.bf16.mxu0 %v796
    %860 = vmatpush1.bf16.msra.mxu0 %v795
    %861 = vmatprep.subr.bf16.mxu0 %v798
    %862 = vmatpush1.bf16.msra.mxu0 %v797
    %863 = vmatprep.mubr.bf16.mxu0 %v626
    %864 = vmatmul.mubr.bf16.gmra.mrb[0].mxu0 %v625
    %v865 = vpop.f32.mrb[0].mxu0
    %v866 = vadd.f32 %v664, %v865
    %v867 = vpop.f32.mrb[0].mxu0
    %v868 = vadd.f32 %v668, %v867
    %v869 = vpop.f32.mrb[0].mxu0
    %v870 = vpop.f32.mrb[0].mxu0
    %871 = vdwg.mxu0
    %v872 = vmul.f32 %v866, 0.01
    %v873 = vmul.f32 %v868, 0.01
    %v874 = vmax.f32 %v866, %v872
    %v875 = vmax.f32 %v868, %v873
    %v876 = vpack.c.bf16 %v874, %v874
    %v877 = vpack.c.bf16 %v875, %v875
    %v878 = vld [vmem:[#allocation7] sm:$0xff]
    %v879 = vld [vmem:[#allocation7 + $0x8] sm:$0xff]
    %v880 = vld [vmem:[#allocation7 + $0x10] sm:$0xff]
    %v881 = vld [vmem:[#allocation7 + $0x18] sm:$0xff]
    %v882 = vld [vmem:[#allocation7 + $0x20] sm:$0xff]
    %v883 = vld [vmem:[#allocation7 + $0x28] sm:$0xff]
    %v884 = vld [vmem:[#allocation7 + $0x30] sm:$0xff]
    %v885 = vld [vmem:[#allocation7 + $0x38] sm:$0xff]
    %v886 = vld [vmem:[#allocation7 + $0x40] sm:$0xff]
    %v887 = vld [vmem:[#allocation7 + $0x48] sm:$0xff]
    %v888 = vld [vmem:[#allocation7 + $0x50] sm:$0xff]
    %v889 = vld [vmem:[#allocation7 + $0x58] sm:$0xff]
    %v890 = vld [vmem:[#allocation7 + $0x60] sm:$0xff]
    %v891 = vld [vmem:[#allocation7 + $0x68] sm:$0xff]
    %v892 = vld [vmem:[#allocation7 + $0x70] sm:$0xff]
    %v893 = vld [vmem:[#allocation7 + $0x78] sm:$0xff]
    %v894 = vld [vmem:[#allocation7 + $0x80] sm:$0xff]
    %v895 = vld [vmem:[#allocation7 + $0x88] sm:$0xff]
    %v896 = vld [vmem:[#allocation7 + $0x90] sm:$0xff]
    %v897 = vld [vmem:[#allocation7 + $0x98] sm:$0xff]
    %v898 = vld [vmem:[#allocation7 + $0xa0] sm:$0xff]
    %v899 = vld [vmem:[#allocation7 + $0xa8] sm:$0xff]
    %v900 = vld [vmem:[#allocation7 + $0xb0] sm:$0xff]
    %v901 = vld [vmem:[#allocation7 + $0xb8] sm:$0xff]
    %v902 = vld [vmem:[#allocation7 + $0xc0] sm:$0xff]
    %v903 = vld [vmem:[#allocation7 + $0xc8] sm:$0xff]
    %v904 = vld [vmem:[#allocation7 + $0xd0] sm:$0xff]
    %v905 = vld [vmem:[#allocation7 + $0xd8] sm:$0xff]
    %v906 = vld [vmem:[#allocation7 + $0xe0] sm:$0xff]
    %v907 = vld [vmem:[#allocation7 + $0xe8] sm:$0xff]
    %v908 = vld [vmem:[#allocation7 + $0xf0] sm:$0xff]
    %v909 = vld [vmem:[#allocation7 + $0xf8] sm:$0xff]
    %v910 = vld [vmem:[%s8] sm:$0x3]
    %v912 = vlaneseq
    %v913 = vshrl.u32 %v912, 7
    %v914 = vsub.s32 0, %v913
    %v915 = vrot.slane %v910, %v914
    %v916 = vlaneseq
    %v917 = vshrl.u32 %v916, 7
    %v918 = vsub.s32 1, %v917
    %v919 = vrot.slane %v910, %v918
    %v954 = vunpack.c.l.b16 %v878
    %v955 = vunpack.c.h.b16 %v878
    %v956 = vunpack.c.l.b16 %v879
    %v957 = vunpack.c.h.b16 %v879
    %v958 = vunpack.c.l.b16 %v880
    %v959 = vunpack.c.h.b16 %v880
    %v960 = vunpack.c.l.b16 %v881
    %v961 = vunpack.c.h.b16 %v881
    %v962 = vunpack.c.l.b16 %v882
    %v963 = vunpack.c.h.b16 %v882
    %v964 = vunpack.c.l.b16 %v883
    %v965 = vunpack.c.h.b16 %v883
    %v966 = vunpack.c.l.b16 %v884
    %v967 = vunpack.c.h.b16 %v884
    %v968 = vunpack.c.l.b16 %v885
    %v969 = vunpack.c.h.b16 %v885
    %v970 = vunpack.c.l.b16 %v886
    %v971 = vunpack.c.h.b16 %v886
    %v972 = vunpack.c.l.b16 %v887
    %v973 = vunpack.c.h.b16 %v887
    %v974 = vunpack.c.l.b16 %v888
    %v975 = vunpack.c.h.b16 %v888
    %v976 = vunpack.c.l.b16 %v889
    %v977 = vunpack.c.h.b16 %v889
    %v978 = vunpack.c.l.b16 %v890
    %v979 = vunpack.c.h.b16 %v890
    %v980 = vunpack.c.l.b16 %v891
    %v981 = vunpack.c.h.b16 %v891
    %v982 = vunpack.c.l.b16 %v892
    %v983 = vunpack.c.h.b16 %v892
    %v984 = vunpack.c.l.b16 %v893
    %v985 = vunpack.c.h.b16 %v893
    %v986 = vunpack.c.l.b16 %v894
    %v987 = vunpack.c.h.b16 %v894
    %v988 = vunpack.c.l.b16 %v895
    %v989 = vunpack.c.h.b16 %v895
    %v990 = vunpack.c.l.b16 %v896
    %v991 = vunpack.c.h.b16 %v896
    %v992 = vunpack.c.l.b16 %v897
    %v993 = vunpack.c.h.b16 %v897
    %v994 = vunpack.c.l.b16 %v898
    %v995 = vunpack.c.h.b16 %v898
    %v996 = vunpack.c.l.b16 %v899
    %v997 = vunpack.c.h.b16 %v899
    %v998 = vunpack.c.l.b16 %v900
    %v999 = vunpack.c.h.b16 %v900
    %v1000 = vunpack.c.l.b16 %v901
    %v1001 = vunpack.c.h.b16 %v901
    %v1002 = vunpack.c.l.b16 %v902
    %v1003 = vunpack.c.h.b16 %v902
    %v1004 = vunpack.c.l.b16 %v903
    %v1005 = vunpack.c.h.b16 %v903
    %v1006 = vunpack.c.l.b16 %v904
    %v1007 = vunpack.c.h.b16 %v904
    %v1008 = vunpack.c.l.b16 %v905
    %v1009 = vunpack.c.h.b16 %v905
    %v1010 = vunpack.c.l.b16 %v906
    %v1011 = vunpack.c.h.b16 %v906
    %v1012 = vunpack.c.l.b16 %v907
    %v1013 = vunpack.c.h.b16 %v907
    %v1014 = vunpack.c.l.b16 %v908
    %v1015 = vunpack.c.h.b16 %v908
    %v1016 = vunpack.c.l.b16 %v909
    %v1017 = vunpack.c.h.b16 %v909
    %v1018 = vpack.c.b16 %v956, %v954
    %v1019 = vpack.c.b16 %v957, %v955
    %v1020 = vpack.c.b16 %v960, %v958
    %v1021 = vpack.c.b16 %v961, %v959
    %v1022 = vpack.c.b16 %v964, %v962
    %v1023 = vpack.c.b16 %v965, %v963
    %v1024 = vpack.c.b16 %v968, %v966
    %v1025 = vpack.c.b16 %v969, %v967
    %v1026 = vpack.c.b16 %v972, %v970
    %v1027 = vpack.c.b16 %v973, %v971
    %v1028 = vpack.c.b16 %v976, %v974
    %v1029 = vpack.c.b16 %v977, %v975
    %v1030 = vpack.c.b16 %v980, %v978
    %v1031 = vpack.c.b16 %v981, %v979
    %v1032 = vpack.c.b16 %v984, %v982
    %v1033 = vpack.c.b16 %v985, %v983
    %v1034 = vpack.c.b16 %v988, %v986
    %v1035 = vpack.c.b16 %v989, %v987
    %v1036 = vpack.c.b16 %v992, %v990
    %v1037 = vpack.c.b16 %v993, %v991
    %v1038 = vpack.c.b16 %v996, %v994
    %v1039 = vpack.c.b16 %v997, %v995
    %v1040 = vpack.c.b16 %v1000, %v998
    %v1041 = vpack.c.b16 %v1001, %v999
    %v1042 = vpack.c.b16 %v1004, %v1002
    %v1043 = vpack.c.b16 %v1005, %v1003
    %v1044 = vpack.c.b16 %v1008, %v1006
    %v1045 = vpack.c.b16 %v1009, %v1007
    %v1046 = vpack.c.b16 %v1012, %v1010
    %v1047 = vpack.c.b16 %v1013, %v1011
    %v1048 = vpack.c.b16 %v1016, %v1014
    %v1049 = vpack.c.b16 %v1017, %v1015
    %1082 = vmatprep.subr.bf16.mxu0 %v1019
    %1083 = vmatpush1.bf16.msra.mxu0 %v1018
    %1084 = vmatprep.subr.bf16.mxu0 %v1021
    %1085 = vmatpush1.bf16.msra.mxu0 %v1020
    %1086 = vmatprep.subr.bf16.mxu0 %v1023
    %1087 = vmatpush1.bf16.msra.mxu0 %v1022
    %1088 = vmatprep.subr.bf16.mxu0 %v1025
    %1089 = vmatpush1.bf16.msra.mxu0 %v1024
    %1090 = vmatprep.subr.bf16.mxu0 %v1027
    %1091 = vmatpush1.bf16.msra.mxu0 %v1026
    %1092 = vmatprep.subr.bf16.mxu0 %v1029
    %1093 = vmatpush1.bf16.msra.mxu0 %v1028
    %1094 = vmatprep.subr.bf16.mxu0 %v1031
    %1095 = vmatpush1.bf16.msra.mxu0 %v1030
    %1096 = vmatprep.subr.bf16.mxu0 %v1033
    %1097 = vmatpush1.bf16.msra.mxu0 %v1032
    %1098 = vmatprep.subr.bf16.mxu0 %v1035
    %1099 = vmatpush1.bf16.msra.mxu0 %v1034
    %1100 = vmatprep.subr.bf16.mxu0 %v1037
    %1101 = vmatpush1.bf16.msra.mxu0 %v1036
    %1102 = vmatprep.subr.bf16.mxu0 %v1039
    %1103 = vmatpush1.bf16.msra.mxu0 %v1038
    %1104 = vmatprep.subr.bf16.mxu0 %v1041
    %1105 = vmatpush1.bf16.msra.mxu0 %v1040
    %1106 = vmatprep.subr.bf16.mxu0 %v1043
    %1107 = vmatpush1.bf16.msra.mxu0 %v1042
    %1108 = vmatprep.subr.bf16.mxu0 %v1045
    %1109 = vmatpush1.bf16.msra.mxu0 %v1044
    %1110 = vmatprep.subr.bf16.mxu0 %v1047
    %1111 = vmatpush1.bf16.msra.mxu0 %v1046
    %1112 = vmatprep.subr.bf16.mxu0 %v1049
    %1113 = vmatpush1.bf16.msra.mxu0 %v1048
    %1114 = vmatprep.mubr.bf16.mxu0 %v877
    %1115 = vmatmul.mubr.bf16.gmra.mrb[0].mxu0 %v876
    %v1116 = vpop.f32.mrb[0].mxu0
    %v1117 = vadd.f32 %v915, %v1116
    %v1118 = vpop.f32.mrb[0].mxu0
    %v1119 = vadd.f32 %v919, %v1118
    %v1120 = vpop.f32.mrb[0].mxu0
    %v1121 = vpop.f32.mrb[0].mxu0
    %1122 = vdwg.mxu0
    %v1123 = vmul.f32 %v1117, 0.01
    %v1124 = vmul.f32 %v1119, 0.01
    %v1125 = vmax.f32 %v1117, %v1123
    %v1126 = vmax.f32 %v1119, %v1124
    %v1127 = vpack.c.bf16 %v1125, %v1125
    %v1128 = vpack.c.bf16 %v1126, %v1126
    %v1129 = vld [vmem:[#allocation9] sm:$0xff]
    %v1130 = vld [vmem:[#allocation9 + $0x8] sm:$0xff]
    %v1131 = vld [vmem:[#allocation9 + $0x10] sm:$0xff]
    %v1132 = vld [vmem:[#allocation9 + $0x18] sm:$0xff]
    %v1133 = vld [vmem:[#allocation9 + $0x20] sm:$0xff]
    %v1134 = vld [vmem:[#allocation9 + $0x28] sm:$0xff]
    %v1135 = vld [vmem:[#allocation9 + $0x30] sm:$0xff]
    %v1136 = vld [vmem:[#allocation9 + $0x38] sm:$0xff]
    %v1137 = vld [vmem:[#allocation9 + $0x40] sm:$0xff]
    %v1138 = vld [vmem:[#allocation9 + $0x48] sm:$0xff]
    %v1139 = vld [vmem:[#allocation9 + $0x50] sm:$0xff]
    %v1140 = vld [vmem:[#allocation9 + $0x58] sm:$0xff]
    %v1141 = vld [vmem:[#allocation9 + $0x60] sm:$0xff]
    %v1142 = vld [vmem:[#allocation9 + $0x68] sm:$0xff]
    %v1143 = vld [vmem:[#allocation9 + $0x70] sm:$0xff]
    %v1144 = vld [vmem:[#allocation9 + $0x78] sm:$0xff]
    %v1145 = vld [vmem:[#allocation9 + $0x80] sm:$0xff]
    %v1146 = vld [vmem:[#allocation9 + $0x88] sm:$0xff]
    %v1147 = vld [vmem:[#allocation9 + $0x90] sm:$0xff]
    %v1148 = vld [vmem:[#allocation9 + $0x98] sm:$0xff]
    %v1149 = vld [vmem:[#allocation9 + $0xa0] sm:$0xff]
    %v1150 = vld [vmem:[#allocation9 + $0xa8] sm:$0xff]
    %v1151 = vld [vmem:[#allocation9 + $0xb0] sm:$0xff]
    %v1152 = vld [vmem:[#allocation9 + $0xb8] sm:$0xff]
    %v1153 = vld [vmem:[#allocation9 + $0xc0] sm:$0xff]
    %v1154 = vld [vmem:[#allocation9 + $0xc8] sm:$0xff]
    %v1155 = vld [vmem:[#allocation9 + $0xd0] sm:$0xff]
    %v1156 = vld [vmem:[#allocation9 + $0xd8] sm:$0xff]
    %v1157 = vld [vmem:[#allocation9 + $0xe0] sm:$0xff]
    %v1158 = vld [vmem:[#allocation9 + $0xe8] sm:$0xff]
    %v1159 = vld [vmem:[#allocation9 + $0xf0] sm:$0xff]
    %v1160 = vld [vmem:[#allocation9 + $0xf8] sm:$0xff]
    %v1161 = vld [vmem:[%s10] sm:$0x3]
    %v1163 = vlaneseq
    %v1164 = vshrl.u32 %v1163, 7
    %v1165 = vsub.s32 0, %v1164
    %v1166 = vrot.slane %v1161, %v1165
    %v1167 = vlaneseq
    %v1168 = vshrl.u32 %v1167, 7
    %v1169 = vsub.s32 1, %v1168
    %v1170 = vrot.slane %v1161, %v1169
    %v1205 = vunpack.c.l.b16 %v1129
    %v1206 = vunpack.c.h.b16 %v1129
    %v1207 = vunpack.c.l.b16 %v1130
    %v1208 = vunpack.c.h.b16 %v1130
    %v1209 = vunpack.c.l.b16 %v1131
    %v1210 = vunpack.c.h.b16 %v1131
    %v1211 = vunpack.c.l.b16 %v1132
    %v1212 = vunpack.c.h.b16 %v1132
    %v1213 = vunpack.c.l.b16 %v1133
    %v1214 = vunpack.c.h.b16 %v1133
    %v1215 = vunpack.c.l.b16 %v1134
    %v1216 = vunpack.c.h.b16 %v1134
    %v1217 = vunpack.c.l.b16 %v1135
    %v1218 = vunpack.c.h.b16 %v1135
    %v1219 = vunpack.c.l.b16 %v1136
    %v1220 = vunpack.c.h.b16 %v1136
    %v1221 = vunpack.c.l.b16 %v1137
    %v1222 = vunpack.c.h.b16 %v1137
    %v1223 = vunpack.c.l.b16 %v1138
    %v1224 = vunpack.c.h.b16 %v1138
    %v1225 = vunpack.c.l.b16 %v1139
    %v1226 = vunpack.c.h.b16 %v1139
    %v1227 = vunpack.c.l.b16 %v1140
    %v1228 = vunpack.c.h.b16 %v1140
    %v1229 = vunpack.c.l.b16 %v1141
    %v1230 = vunpack.c.h.b16 %v1141
    %v1231 = vunpack.c.l.b16 %v1142
    %v1232 = vunpack.c.h.b16 %v1142
    %v1233 = vunpack.c.l.b16 %v1143
    %v1234 = vunpack.c.h.b16 %v1143
    %v1235 = vunpack.c.l.b16 %v1144
    %v1236 = vunpack.c.h.b16 %v1144
    %v1237 = vunpack.c.l.b16 %v1145
    %v1238 = vunpack.c.h.b16 %v1145
    %v1239 = vunpack.c.l.b16 %v1146
    %v1240 = vunpack.c.h.b16 %v1146
    %v1241 = vunpack.c.l.b16 %v1147
    %v1242 = vunpack.c.h.b16 %v1147
    %v1243 = vunpack.c.l.b16 %v1148
    %v1244 = vunpack.c.h.b16 %v1148
    %v1245 = vunpack.c.l.b16 %v1149
    %v1246 = vunpack.c.h.b16 %v1149
    %v1247 = vunpack.c.l.b16 %v1150
    %v1248 = vunpack.c.h.b16 %v1150
    %v1249 = vunpack.c.l.b16 %v1151
    %v1250 = vunpack.c.h.b16 %v1151
    %v1251 = vunpack.c.l.b16 %v1152
    %v1252 = vunpack.c.h.b16 %v1152
    %v1253 = vunpack.c.l.b16 %v1153
    %v1254 = vunpack.c.h.b16 %v1153
    %v1255 = vunpack.c.l.b16 %v1154
    %v1256 = vunpack.c.h.b16 %v1154
    %v1257 = vunpack.c.l.b16 %v1155
    %v1258 = vunpack.c.h.b16 %v1155
    %v1259 = vunpack.c.l.b16 %v1156
    %v1260 = vunpack.c.h.b16 %v1156
    %v1261 = vunpack.c.l.b16 %v1157
    %v1262 = vunpack.c.h.b16 %v1157
    %v1263 = vunpack.c.l.b16 %v1158
    %v1264 = vunpack.c.h.b16 %v1158
    %v1265 = vunpack.c.l.b16 %v1159
    %v1266 = vunpack.c.h.b16 %v1159
    %v1267 = vunpack.c.l.b16 %v1160
    %v1268 = vunpack.c.h.b16 %v1160
    %v1269 = vpack.c.b16 %v1207, %v1205
    %v1270 = vpack.c.b16 %v1208, %v1206
    %v1271 = vpack.c.b16 %v1211, %v1209
    %v1272 = vpack.c.b16 %v1212, %v1210
    %v1273 = vpack.c.b16 %v1215, %v1213
    %v1274 = vpack.c.b16 %v1216, %v1214
    %v1275 = vpack.c.b16 %v1219, %v1217
    %v1276 = vpack.c.b16 %v1220, %v1218
    %v1277 = vpack.c.b16 %v1223, %v1221
    %v1278 = vpack.c.b16 %v1224, %v1222
    %v1279 = vpack.c.b16 %v1227, %v1225
    %v1280 = vpack.c.b16 %v1228, %v1226
    %v1281 = vpack.c.b16 %v1231, %v1229
    %v1282 = vpack.c.b16 %v1232, %v1230
    %v1283 = vpack.c.b16 %v1235, %v1233
    %v1284 = vpack.c.b16 %v1236, %v1234
    %v1285 = vpack.c.b16 %v1239, %v1237
    %v1286 = vpack.c.b16 %v1240, %v1238
    %v1287 = vpack.c.b16 %v1243, %v1241
    %v1288 = vpack.c.b16 %v1244, %v1242
    %v1289 = vpack.c.b16 %v1247, %v1245
    %v1290 = vpack.c.b16 %v1248, %v1246
    %v1291 = vpack.c.b16 %v1251, %v1249
    %v1292 = vpack.c.b16 %v1252, %v1250
    %v1293 = vpack.c.b16 %v1255, %v1253
    %v1294 = vpack.c.b16 %v1256, %v1254
    %v1295 = vpack.c.b16 %v1259, %v1257
    %v1296 = vpack.c.b16 %v1260, %v1258
    %v1297 = vpack.c.b16 %v1263, %v1261
    %v1298 = vpack.c.b16 %v1264, %v1262
    %v1299 = vpack.c.b16 %v1267, %v1265
    %v1300 = vpack.c.b16 %v1268, %v1266
    %1333 = vmatprep.subr.bf16.mxu0 %v1270
    %1334 = vmatpush1.bf16.msra.mxu0 %v1269
    %1335 = vmatprep.subr.bf16.mxu0 %v1272
    %1336 = vmatpush1.bf16.msra.mxu0 %v1271
    %1337 = vmatprep.subr.bf16.mxu0 %v1274
    %1338 = vmatpush1.bf16.msra.mxu0 %v1273
    %1339 = vmatprep.subr.bf16.mxu0 %v1276
    %1340 = vmatpush1.bf16.msra.mxu0 %v1275
    %1341 = vmatprep.subr.bf16.mxu0 %v1278
    %1342 = vmatpush1.bf16.msra.mxu0 %v1277
    %1343 = vmatprep.subr.bf16.mxu0 %v1280
    %1344 = vmatpush1.bf16.msra.mxu0 %v1279
    %1345 = vmatprep.subr.bf16.mxu0 %v1282
    %1346 = vmatpush1.bf16.msra.mxu0 %v1281
    %1347 = vmatprep.subr.bf16.mxu0 %v1284
    %1348 = vmatpush1.bf16.msra.mxu0 %v1283
    %1349 = vmatprep.subr.bf16.mxu0 %v1286
    %1350 = vmatpush1.bf16.msra.mxu0 %v1285
    %1351 = vmatprep.subr.bf16.mxu0 %v1288
    %1352 = vmatpush1.bf16.msra.mxu0 %v1287
    %1353 = vmatprep.subr.bf16.mxu0 %v1290
    %1354 = vmatpush1.bf16.msra.mxu0 %v1289
    %1355 = vmatprep.subr.bf16.mxu0 %v1292
    %1356 = vmatpush1.bf16.msra.mxu0 %v1291
    %1357 = vmatprep.subr.bf16.mxu0 %v1294
    %1358 = vmatpush1.bf16.msra.mxu0 %v1293
    %1359 = vmatprep.subr.bf16.mxu0 %v1296
    %1360 = vmatpush1.bf16.msra.mxu0 %v1295
    %1361 = vmatprep.subr.bf16.mxu0 %v1298
    %1362 = vmatpush1.bf16.msra.mxu0 %v1297
    %1363 = vmatprep.subr.bf16.mxu0 %v1300
    %1364 = vmatpush1.bf16.msra.mxu0 %v1299
    %1365 = vmatprep.mubr.bf16.mxu0 %v1128
    %1366 = vmatmul.mubr.bf16.gmra.mrb[0].mxu0 %v1127
    %v1367 = vpop.f32.mrb[0].mxu0
    %v1368 = vadd.f32 %v1166, %v1367
    %v1369 = vpop.f32.mrb[0].mxu0
    %v1370 = vadd.f32 %v1170, %v1369
    %v1371 = vpop.f32.mrb[0].mxu0
    %v1372 = vpop.f32.mrb[0].mxu0
    %1373 = vdwg.mxu0
    %v1374 = vmul.f32 %v1368, 0.01
    %v1375 = vmul.f32 %v1370, 0.01
    %v1376 = vmax.f32 %v1368, %v1374
    %v1377 = vmax.f32 %v1370, %v1375
    %v1378 = vpack.c.bf16 %v1376, %v1376
    %v1379 = vpack.c.bf16 %v1377, %v1377
    %v1380 = vld [vmem:[#allocation10] sm:$0xff]
    %v1381 = vld [vmem:[#allocation10 + $0x8] sm:$0xff]
    %v1382 = vld [vmem:[#allocation10 + $0x10] sm:$0xff]
    %v1383 = vld [vmem:[#allocation10 + $0x18] sm:$0xff]
    %v1384 = vld [vmem:[#allocation10 + $0x20] sm:$0xff]
    %v1385 = vld [vmem:[#allocation10 + $0x28] sm:$0xff]
    %v1386 = vld [vmem:[#allocation10 + $0x30] sm:$0xff]
    %v1387 = vld [vmem:[#allocation10 + $0x38] sm:$0xff]
    %v1388 = vld [vmem:[#allocation10 + $0x40] sm:$0xff]
    %v1389 = vld [vmem:[#allocation10 + $0x48] sm:$0xff]
    %v1390 = vld [vmem:[#allocation10 + $0x50] sm:$0xff]
    %v1391 = vld [vmem:[#allocation10 + $0x58] sm:$0xff]
    %v1392 = vld [vmem:[#allocation10 + $0x60] sm:$0xff]
    %v1393 = vld [vmem:[#allocation10 + $0x68] sm:$0xff]
    %v1394 = vld [vmem:[#allocation10 + $0x70] sm:$0xff]
    %v1395 = vld [vmem:[#allocation10 + $0x78] sm:$0xff]
    %v1396 = vld [vmem:[#allocation10 + $0x80] sm:$0xff]
    %v1397 = vld [vmem:[#allocation10 + $0x88] sm:$0xff]
    %v1398 = vld [vmem:[#allocation10 + $0x90] sm:$0xff]
    %v1399 = vld [vmem:[#allocation10 + $0x98] sm:$0xff]
    %v1400 = vld [vmem:[#allocation10 + $0xa0] sm:$0xff]
    %v1401 = vld [vmem:[#allocation10 + $0xa8] sm:$0xff]
    %v1402 = vld [vmem:[#allocation10 + $0xb0] sm:$0xff]
    %v1403 = vld [vmem:[#allocation10 + $0xb8] sm:$0xff]
    %v1404 = vld [vmem:[#allocation10 + $0xc0] sm:$0xff]
    %v1405 = vld [vmem:[#allocation10 + $0xc8] sm:$0xff]
    %v1406 = vld [vmem:[#allocation10 + $0xd0] sm:$0xff]
    %v1407 = vld [vmem:[#allocation10 + $0xd8] sm:$0xff]
    %v1408 = vld [vmem:[#allocation10 + $0xe0] sm:$0xff]
    %v1409 = vld [vmem:[#allocation10 + $0xe8] sm:$0xff]
    %v1410 = vld [vmem:[#allocation10 + $0xf0] sm:$0xff]
    %v1411 = vld [vmem:[#allocation10 + $0xf8] sm:$0xff]
    %v1412 = vld [vmem:[%s12] sm:$0x3]
    %v1414 = vlaneseq
    %v1415 = vshrl.u32 %v1414, 7
    %v1416 = vsub.s32 0, %v1415
    %v1417 = vrot.slane %v1412, %v1416
    %v1418 = vlaneseq
    %v1419 = vshrl.u32 %v1418, 7
    %v1420 = vsub.s32 1, %v1419
    %v1421 = vrot.slane %v1412, %v1420
    %v1456 = vunpack.c.l.b16 %v1380
    %v1457 = vunpack.c.h.b16 %v1380
    %v1458 = vunpack.c.l.b16 %v1381
    %v1459 = vunpack.c.h.b16 %v1381
    %v1460 = vunpack.c.l.b16 %v1382
    %v1461 = vunpack.c.h.b16 %v1382
    %v1462 = vunpack.c.l.b16 %v1383
    %v1463 = vunpack.c.h.b16 %v1383
    %v1464 = vunpack.c.l.b16 %v1384
    %v1465 = vunpack.c.h.b16 %v1384
    %v1466 = vunpack.c.l.b16 %v1385
    %v1467 = vunpack.c.h.b16 %v1385
    %v1468 = vunpack.c.l.b16 %v1386
    %v1469 = vunpack.c.h.b16 %v1386
    %v1470 = vunpack.c.l.b16 %v1387
    %v1471 = vunpack.c.h.b16 %v1387
    %v1472 = vunpack.c.l.b16 %v1388
    %v1473 = vunpack.c.h.b16 %v1388
    %v1474 = vunpack.c.l.b16 %v1389
    %v1475 = vunpack.c.h.b16 %v1389
    %v1476 = vunpack.c.l.b16 %v1390
    %v1477 = vunpack.c.h.b16 %v1390
    %v1478 = vunpack.c.l.b16 %v1391
    %v1479 = vunpack.c.h.b16 %v1391
    %v1480 = vunpack.c.l.b16 %v1392
    %v1481 = vunpack.c.h.b16 %v1392
    %v1482 = vunpack.c.l.b16 %v1393
    %v1483 = vunpack.c.h.b16 %v1393
    %v1484 = vunpack.c.l.b16 %v1394
    %v1485 = vunpack.c.h.b16 %v1394
    %v1486 = vunpack.c.l.b16 %v1395
    %v1487 = vunpack.c.h.b16 %v1395
    %v1488 = vunpack.c.l.b16 %v1396
    %v1489 = vunpack.c.h.b16 %v1396
    %v1490 = vunpack.c.l.b16 %v1397
    %v1491 = vunpack.c.h.b16 %v1397
    %v1492 = vunpack.c.l.b16 %v1398
    %v1493 = vunpack.c.h.b16 %v1398
    %v1494 = vunpack.c.l.b16 %v1399
    %v1495 = vunpack.c.h.b16 %v1399
    %v1496 = vunpack.c.l.b16 %v1400
    %v1497 = vunpack.c.h.b16 %v1400
    %v1498 = vunpack.c.l.b16 %v1401
    %v1499 = vunpack.c.h.b16 %v1401
    %v1500 = vunpack.c.l.b16 %v1402
    %v1501 = vunpack.c.h.b16 %v1402
    %v1502 = vunpack.c.l.b16 %v1403
    %v1503 = vunpack.c.h.b16 %v1403
    %v1504 = vunpack.c.l.b16 %v1404
    %v1505 = vunpack.c.h.b16 %v1404
    %v1506 = vunpack.c.l.b16 %v1405
    %v1507 = vunpack.c.h.b16 %v1405
    %v1508 = vunpack.c.l.b16 %v1406
    %v1509 = vunpack.c.h.b16 %v1406
    %v1510 = vunpack.c.l.b16 %v1407
    %v1511 = vunpack.c.h.b16 %v1407
    %v1512 = vunpack.c.l.b16 %v1408
    %v1513 = vunpack.c.h.b16 %v1408
    %v1514 = vunpack.c.l.b16 %v1409
    %v1515 = vunpack.c.h.b16 %v1409
    %v1516 = vunpack.c.l.b16 %v1410
    %v1517 = vunpack.c.h.b16 %v1410
    %v1518 = vunpack.c.l.b16 %v1411
    %v1519 = vunpack.c.h.b16 %v1411
    %v1520 = vpack.c.b16 %v1458, %v1456
    %v1521 = vpack.c.b16 %v1459, %v1457
    %v1522 = vpack.c.b16 %v1462, %v1460
    %v1523 = vpack.c.b16 %v1463, %v1461
    %v1524 = vpack.c.b16 %v1466, %v1464
    %v1525 = vpack.c.b16 %v1467, %v1465
    %v1526 = vpack.c.b16 %v1470, %v1468
    %v1527 = vpack.c.b16 %v1471, %v1469
    %v1528 = vpack.c.b16 %v1474, %v1472
    %v1529 = vpack.c.b16 %v1475, %v1473
    %v1530 = vpack.c.b16 %v1478, %v1476
    %v1531 = vpack.c.b16 %v1479, %v1477
    %v1532 = vpack.c.b16 %v1482, %v1480
    %v1533 = vpack.c.b16 %v1483, %v1481
    %v1534 = vpack.c.b16 %v1486, %v1484
    %v1535 = vpack.c.b16 %v1487, %v1485
    %v1536 = vpack.c.b16 %v1490, %v1488
    %v1537 = vpack.c.b16 %v1491, %v1489
    %v1538 = vpack.c.b16 %v1494, %v1492
    %v1539 = vpack.c.b16 %v1495, %v1493
    %v1540 = vpack.c.b16 %v1498, %v1496
    %v1541 = vpack.c.b16 %v1499, %v1497
    %v1542 = vpack.c.b16 %v1502, %v1500
    %v1543 = vpack.c.b16 %v1503, %v1501
    %v1544 = vpack.c.b16 %v1506, %v1504
    %v1545 = vpack.c.b16 %v1507, %v1505
    %v1546 = vpack.c.b16 %v1510, %v1508
    %v1547 = vpack.c.b16 %v1511, %v1509
    %v1548 = vpack.c.b16 %v1514, %v1512
    %v1549 = vpack.c.b16 %v1515, %v1513
    %v1550 = vpack.c.b16 %v1518, %v1516
    %v1551 = vpack.c.b16 %v1519, %v1517
    %1584 = vmatprep.subr.bf16.mxu0 %v1521
    %1585 = vmatpush1.bf16.msra.mxu0 %v1520
    %1586 = vmatprep.subr.bf16.mxu0 %v1523
    %1587 = vmatpush1.bf16.msra.mxu0 %v1522
    %1588 = vmatprep.subr.bf16.mxu0 %v1525
    %1589 = vmatpush1.bf16.msra.mxu0 %v1524
    %1590 = vmatprep.subr.bf16.mxu0 %v1527
    %1591 = vmatpush1.bf16.msra.mxu0 %v1526
    %1592 = vmatprep.subr.bf16.mxu0 %v1529
    %1593 = vmatpush1.bf16.msra.mxu0 %v1528
    %1594 = vmatprep.subr.bf16.mxu0 %v1531
    %1595 = vmatpush1.bf16.msra.mxu0 %v1530
    %1596 = vmatprep.subr.bf16.mxu0 %v1533
    %1597 = vmatpush1.bf16.msra.mxu0 %v1532
    %1598 = vmatprep.subr.bf16.mxu0 %v1535
    %1599 = vmatpush1.bf16.msra.mxu0 %v1534
    %1600 = vmatprep.subr.bf16.mxu0 %v1537
    %1601 = vmatpush1.bf16.msra.mxu0 %v1536
    %1602 = vmatprep.subr.bf16.mxu0 %v1539
    %1603 = vmatpush1.bf16.msra.mxu0 %v1538
    %1604 = vmatprep.subr.bf16.mxu0 %v1541
    %1605 = vmatpush1.bf16.msra.mxu0 %v1540
    %1606 = vmatprep.subr.bf16.mxu0 %v1543
    %1607 = vmatpush1.bf16.msra.mxu0 %v1542
    %1608 = vmatprep.subr.bf16.mxu0 %v1545
    %1609 = vmatpush1.bf16.msra.mxu0 %v1544
    %1610 = vmatprep.subr.bf16.mxu0 %v1547
    %1611 = vmatpush1.bf16.msra.mxu0 %v1546
    %1612 = vmatprep.subr.bf16.mxu0 %v1549
    %1613 = vmatpush1.bf16.msra.mxu0 %v1548
    %1614 = vmatprep.subr.bf16.mxu0 %v1551
    %1615 = vmatpush1.bf16.msra.mxu0 %v1550
    %1616 = vmatprep.mubr.bf16.mxu0 %v1379
    %1617 = vmatmul.mubr.bf16.gmra.mrb[0].mxu0 %v1378
    %v1618 = vpop.f32.mrb[0].mxu0
    %v1619 = vadd.f32 %v1417, %v1618
    %v1620 = vpop.f32.mrb[0].mxu0
    %v1621 = vadd.f32 %v1421, %v1620
    %v1622 = vpop.f32.mrb[0].mxu0
    %v1623 = vpop.f32.mrb[0].mxu0
    %1624 = vdwg.mxu0
    %v1625 = vmul.f32 %v1619, 0.01
    %v1626 = vmul.f32 %v1621, 0.01
    %v1627 = vmax.f32 %v1619, %v1625
    %v1628 = vmax.f32 %v1621, %v1626
    %v1629 = vpack.c.bf16 %v1627, %v1627
    %v1630 = vpack.c.bf16 %v1628, %v1628
    %v1631 = vld [vmem:[#allocation12] sm:$0xff]
    %v1632 = vld [vmem:[#allocation12 + $0x8] sm:$0xff]
    %v1633 = vld [vmem:[#allocation12 + $0x10] sm:$0xff]
    %v1634 = vld [vmem:[#allocation12 + $0x18] sm:$0xff]
    %v1635 = vld [vmem:[#allocation12 + $0x20] sm:$0xff]
    %v1636 = vld [vmem:[#allocation12 + $0x28] sm:$0xff]
    %v1637 = vld [vmem:[#allocation12 + $0x30] sm:$0xff]
    %v1638 = vld [vmem:[#allocation12 + $0x38] sm:$0xff]
    %v1639 = vld [vmem:[#allocation12 + $0x40] sm:$0xff]
    %v1640 = vld [vmem:[#allocation12 + $0x48] sm:$0xff]
    %v1641 = vld [vmem:[#allocation12 + $0x50] sm:$0xff]
    %v1642 = vld [vmem:[#allocation12 + $0x58] sm:$0xff]
    %v1643 = vld [vmem:[#allocation12 + $0x60] sm:$0xff]
    %v1644 = vld [vmem:[#allocation12 + $0x68] sm:$0xff]
    %v1645 = vld [vmem:[#allocation12 + $0x70] sm:$0xff]
    %v1646 = vld [vmem:[#allocation12 + $0x78] sm:$0xff]
    %v1647 = vld [vmem:[#allocation12 + $0x80] sm:$0xff]
    %v1648 = vld [vmem:[#allocation12 + $0x88] sm:$0xff]
    %v1649 = vld [vmem:[#allocation12 + $0x90] sm:$0xff]
    %v1650 = vld [vmem:[#allocation12 + $0x98] sm:$0xff]
    %v1651 = vld [vmem:[#allocation12 + $0xa0] sm:$0xff]
    %v1652 = vld [vmem:[#allocation12 + $0xa8] sm:$0xff]
    %v1653 = vld [vmem:[#allocation12 + $0xb0] sm:$0xff]
    %v1654 = vld [vmem:[#allocation12 + $0xb8] sm:$0xff]
    %v1655 = vld [vmem:[#allocation12 + $0xc0] sm:$0xff]
    %v1656 = vld [vmem:[#allocation12 + $0xc8] sm:$0xff]
    %v1657 = vld [vmem:[#allocation12 + $0xd0] sm:$0xff]
    %v1658 = vld [vmem:[#allocation12 + $0xd8] sm:$0xff]
    %v1659 = vld [vmem:[#allocation12 + $0xe0] sm:$0xff]
    %v1660 = vld [vmem:[#allocation12 + $0xe8] sm:$0xff]
    %v1661 = vld [vmem:[#allocation12 + $0xf0] sm:$0xff]
    %v1662 = vld [vmem:[#allocation12 + $0xf8] sm:$0xff]
    %v1663 = vld [vmem:[%s14] sm:$0x3]
    %v1665 = vlaneseq
    %v1666 = vshrl.u32 %v1665, 7
    %v1667 = vsub.s32 0, %v1666
    %v1668 = vrot.slane %v1663, %v1667
    %v1669 = vlaneseq
    %v1670 = vshrl.u32 %v1669, 7
    %v1671 = vsub.s32 1, %v1670
    %v1672 = vrot.slane %v1663, %v1671
    %v1707 = vunpack.c.l.b16 %v1631
    %v1708 = vunpack.c.h.b16 %v1631
    %v1709 = vunpack.c.l.b16 %v1632
    %v1710 = vunpack.c.h.b16 %v1632
    %v1711 = vunpack.c.l.b16 %v1633
    %v1712 = vunpack.c.h.b16 %v1633
    %v1713 = vunpack.c.l.b16 %v1634
    %v1714 = vunpack.c.h.b16 %v1634
    %v1715 = vunpack.c.l.b16 %v1635
    %v1716 = vunpack.c.h.b16 %v1635
    %v1717 = vunpack.c.l.b16 %v1636
    %v1718 = vunpack.c.h.b16 %v1636
    %v1719 = vunpack.c.l.b16 %v1637
    %v1720 = vunpack.c.h.b16 %v1637
    %v1721 = vunpack.c.l.b16 %v1638
    %v1722 = vunpack.c.h.b16 %v1638
    %v1723 = vunpack.c.l.b16 %v1639
    %v1724 = vunpack.c.h.b16 %v1639
    %v1725 = vunpack.c.l.b16 %v1640
    %v1726 = vunpack.c.h.b16 %v1640
    %v1727 = vunpack.c.l.b16 %v1641
    %v1728 = vunpack.c.h.b16 %v1641
    %v1729 = vunpack.c.l.b16 %v1642
    %v1730 = vunpack.c.h.b16 %v1642
    %v1731 = vunpack.c.l.b16 %v1643
    %v1732 = vunpack.c.h.b16 %v1643
    %v1733 = vunpack.c.l.b16 %v1644
    %v1734 = vunpack.c.h.b16 %v1644
    %v1735 = vunpack.c.l.b16 %v1645
    %v1736 = vunpack.c.h.b16 %v1645
    %v1737 = vunpack.c.l.b16 %v1646
    %v1738 = vunpack.c.h.b16 %v1646
    %v1739 = vunpack.c.l.b16 %v1647
    %v1740 = vunpack.c.h.b16 %v1647
    %v1741 = vunpack.c.l.b16 %v1648
    %v1742 = vunpack.c.h.b16 %v1648
    %v1743 = vunpack.c.l.b16 %v1649
    %v1744 = vunpack.c.h.b16 %v1649
    %v1745 = vunpack.c.l.b16 %v1650
    %v1746 = vunpack.c.h.b16 %v1650
    %v1747 = vunpack.c.l.b16 %v1651
    %v1748 = vunpack.c.h.b16 %v1651
    %v1749 = vunpack.c.l.b16 %v1652
    %v1750 = vunpack.c.h.b16 %v1652
    %v1751 = vunpack.c.l.b16 %v1653
    %v1752 = vunpack.c.h.b16 %v1653
    %v1753 = vunpack.c.l.b16 %v1654
    %v1754 = vunpack.c.h.b16 %v1654
    %v1755 = vunpack.c.l.b16 %v1655
    %v1756 = vunpack.c.h.b16 %v1655
    %v1757 = vunpack.c.l.b16 %v1656
    %v1758 = vunpack.c.h.b16 %v1656
    %v1759 = vunpack.c.l.b16 %v1657
    %v1760 = vunpack.c.h.b16 %v1657
    %v1761 = vunpack.c.l.b16 %v1658
    %v1762 = vunpack.c.h.b16 %v1658
    %v1763 = vunpack.c.l.b16 %v1659
    %v1764 = vunpack.c.h.b16 %v1659
    %v1765 = vunpack.c.l.b16 %v1660
    %v1766 = vunpack.c.h.b16 %v1660
    %v1767 = vunpack.c.l.b16 %v1661
    %v1768 = vunpack.c.h.b16 %v1661
    %v1769 = vunpack.c.l.b16 %v1662
    %v1770 = vunpack.c.h.b16 %v1662
    %v1771 = vpack.c.b16 %v1709, %v1707
    %v1772 = vpack.c.b16 %v1710, %v1708
    %v1773 = vpack.c.b16 %v1713, %v1711
    %v1774 = vpack.c.b16 %v1714, %v1712
    %v1775 = vpack.c.b16 %v1717, %v1715
    %v1776 = vpack.c.b16 %v1718, %v1716
    %v1777 = vpack.c.b16 %v1721, %v1719
    %v1778 = vpack.c.b16 %v1722, %v1720
    %v1779 = vpack.c.b16 %v1725, %v1723
    %v1780 = vpack.c.b16 %v1726, %v1724
    %v1781 = vpack.c.b16 %v1729, %v1727
    %v1782 = vpack.c.b16 %v1730, %v1728
    %v1783 = vpack.c.b16 %v1733, %v1731
    %v1784 = vpack.c.b16 %v1734, %v1732
    %v1785 = vpack.c.b16 %v1737, %v1735
    %v1786 = vpack.c.b16 %v1738, %v1736
    %v1787 = vpack.c.b16 %v1741, %v1739
    %v1788 = vpack.c.b16 %v1742, %v1740
    %v1789 = vpack.c.b16 %v1745, %v1743
    %v1790 = vpack.c.b16 %v1746, %v1744
    %v1791 = vpack.c.b16 %v1749, %v1747
    %v1792 = vpack.c.b16 %v1750, %v1748
    %v1793 = vpack.c.b16 %v1753, %v1751
    %v1794 = vpack.c.b16 %v1754, %v1752
    %v1795 = vpack.c.b16 %v1757, %v1755
    %v1796 = vpack.c.b16 %v1758, %v1756
    %v1797 = vpack.c.b16 %v1761, %v1759
    %v1798 = vpack.c.b16 %v1762, %v1760
    %v1799 = vpack.c.b16 %v1765, %v1763
    %v1800 = vpack.c.b16 %v1766, %v1764
    %v1801 = vpack.c.b16 %v1769, %v1767
    %v1802 = vpack.c.b16 %v1770, %v1768
    %1835 = vmatprep.subr.bf16.mxu0 %v1772
    %1836 = vmatpush1.bf16.msra.mxu0 %v1771
    %1837 = vmatprep.subr.bf16.mxu0 %v1774
    %1838 = vmatpush1.bf16.msra.mxu0 %v1773
    %1839 = vmatprep.subr.bf16.mxu0 %v1776
    %1840 = vmatpush1.bf16.msra.mxu0 %v1775
    %1841 = vmatprep.subr.bf16.mxu0 %v1778
    %1842 = vmatpush1.bf16.msra.mxu0 %v1777
    %1843 = vmatprep.subr.bf16.mxu0 %v1780
    %1844 = vmatpush1.bf16.msra.mxu0 %v1779
    %1845 = vmatprep.subr.bf16.mxu0 %v1782
    %1846 = vmatpush1.bf16.msra.mxu0 %v1781
    %1847 = vmatprep.subr.bf16.mxu0 %v1784
    %1848 = vmatpush1.bf16.msra.mxu0 %v1783
    %1849 = vmatprep.subr.bf16.mxu0 %v1786
    %1850 = vmatpush1.bf16.msra.mxu0 %v1785
    %1851 = vmatprep.subr.bf16.mxu0 %v1788
    %1852 = vmatpush1.bf16.msra.mxu0 %v1787
    %1853 = vmatprep.subr.bf16.mxu0 %v1790
    %1854 = vmatpush1.bf16.msra.mxu0 %v1789
    %1855 = vmatprep.subr.bf16.mxu0 %v1792
    %1856 = vmatpush1.bf16.msra.mxu0 %v1791
    %1857 = vmatprep.subr.bf16.mxu0 %v1794
    %1858 = vmatpush1.bf16.msra.mxu0 %v1793
    %1859 = vmatprep.subr.bf16.mxu0 %v1796
    %1860 = vmatpush1.bf16.msra.mxu0 %v1795
    %1861 = vmatprep.subr.bf16.mxu0 %v1798
    %1862 = vmatpush1.bf16.msra.mxu0 %v1797
    %1863 = vmatprep.subr.bf16.mxu0 %v1800
    %1864 = vmatpush1.bf16.msra.mxu0 %v1799
    %1865 = vmatprep.subr.bf16.mxu0 %v1802
    %1866 = vmatpush1.bf16.msra.mxu0 %v1801
    %1867 = vmatprep.mubr.bf16.mxu0 %v1630
    %1868 = vmatmul.mubr.bf16.gmra.mrb[0].mxu0 %v1629
    %v1869 = vpop.f32.mrb[0].mxu0
    %v1870 = vadd.f32 %v1668, %v1869
    %v1871 = vpop.f32.mrb[0].mxu0
    %v1872 = vadd.f32 %v1672, %v1871
    %v1873 = vpop.f32.mrb[0].mxu0
    %v1874 = vpop.f32.mrb[0].mxu0
    %1875 = vdwg.mxu0
    %v1876 = vmul.f32 %v1870, 0.01
    %v1877 = vmul.f32 %v1872, 0.01
    %v1878 = vmax.f32 %v1870, %v1876
    %v1879 = vmax.f32 %v1872, %v1877
    %v1880 = vpack.c.bf16 %v1878, %v1878
    %v1881 = vpack.c.bf16 %v1879, %v1879
    %v1882 = vld [vmem:[#allocation13] sm:$0xff]
    %v1883 = vld [vmem:[#allocation13 + $0x8] sm:$0xff]
    %v1884 = vld [vmem:[#allocation13 + $0x10] sm:$0xff]
    %v1885 = vld [vmem:[#allocation13 + $0x18] sm:$0xff]
    %v1886 = vld [vmem:[#allocation13 + $0x20] sm:$0xff]
    %v1887 = vld [vmem:[#allocation13 + $0x28] sm:$0xff]
    %v1888 = vld [vmem:[#allocation13 + $0x30] sm:$0xff]
    %v1889 = vld [vmem:[#allocation13 + $0x38] sm:$0xff]
    %v1890 = vld [vmem:[#allocation13 + $0x40] sm:$0xff]
    %v1891 = vld [vmem:[#allocation13 + $0x48] sm:$0xff]
    %v1892 = vld [vmem:[#allocation13 + $0x50] sm:$0xff]
    %v1893 = vld [vmem:[#allocation13 + $0x58] sm:$0xff]
    %v1894 = vld [vmem:[#allocation13 + $0x60] sm:$0xff]
    %v1895 = vld [vmem:[#allocation13 + $0x68] sm:$0xff]
    %v1896 = vld [vmem:[#allocation13 + $0x70] sm:$0xff]
    %v1897 = vld [vmem:[#allocation13 + $0x78] sm:$0xff]
    %v1898 = vld [vmem:[#allocation13 + $0x80] sm:$0xff]
    %v1899 = vld [vmem:[#allocation13 + $0x88] sm:$0xff]
    %v1900 = vld [vmem:[#allocation13 + $0x90] sm:$0xff]
    %v1901 = vld [vmem:[#allocation13 + $0x98] sm:$0xff]
    %v1902 = vld [vmem:[#allocation13 + $0xa0] sm:$0xff]
    %v1903 = vld [vmem:[#allocation13 + $0xa8] sm:$0xff]
    %v1904 = vld [vmem:[#allocation13 + $0xb0] sm:$0xff]
    %v1905 = vld [vmem:[#allocation13 + $0xb8] sm:$0xff]
    %v1906 = vld [vmem:[#allocation13 + $0xc0] sm:$0xff]
    %v1907 = vld [vmem:[#allocation13 + $0xc8] sm:$0xff]
    %v1908 = vld [vmem:[#allocation13 + $0xd0] sm:$0xff]
    %v1909 = vld [vmem:[#allocation13 + $0xd8] sm:$0xff]
    %v1910 = vld [vmem:[#allocation13 + $0xe0] sm:$0xff]
    %v1911 = vld [vmem:[#allocation13 + $0xe8] sm:$0xff]
    %v1912 = vld [vmem:[#allocation13 + $0xf0] sm:$0xff]
    %v1913 = vld [vmem:[#allocation13 + $0xf8] sm:$0xff]
    %v1914 = vld [vmem:[%s16] sm:$0x3]
    %v1916 = vlaneseq
    %v1917 = vshrl.u32 %v1916, 7
    %v1918 = vsub.s32 0, %v1917
    %v1919 = vrot.slane %v1914, %v1918
    %v1920 = vlaneseq
    %v1921 = vshrl.u32 %v1920, 7
    %v1922 = vsub.s32 1, %v1921
    %v1923 = vrot.slane %v1914, %v1922
    %v1958 = vunpack.c.l.b16 %v1882
    %v1959 = vunpack.c.h.b16 %v1882
    %v1960 = vunpack.c.l.b16 %v1883
    %v1961 = vunpack.c.h.b16 %v1883
    %v1962 = vunpack.c.l.b16 %v1884
    %v1963 = vunpack.c.h.b16 %v1884
    %v1964 = vunpack.c.l.b16 %v1885
    %v1965 = vunpack.c.h.b16 %v1885
    %v1966 = vunpack.c.l.b16 %v1886
    %v1967 = vunpack.c.h.b16 %v1886
    %v1968 = vunpack.c.l.b16 %v1887
    %v1969 = vunpack.c.h.b16 %v1887
    %v1970 = vunpack.c.l.b16 %v1888
    %v1971 = vunpack.c.h.b16 %v1888
    %v1972 = vunpack.c.l.b16 %v1889
    %v1973 = vunpack.c.h.b16 %v1889
    %v1974 = vunpack.c.l.b16 %v1890
    %v1975 = vunpack.c.h.b16 %v1890
    %v1976 = vunpack.c.l.b16 %v1891
    %v1977 = vunpack.c.h.b16 %v1891
    %v1978 = vunpack.c.l.b16 %v1892
    %v1979 = vunpack.c.h.b16 %v1892
    %v1980 = vunpack.c.l.b16 %v1893
    %v1981 = vunpack.c.h.b16 %v1893
    %v1982 = vunpack.c.l.b16 %v1894
    %v1983 = vunpack.c.h.b16 %v1894
    %v1984 = vunpack.c.l.b16 %v1895
    %v1985 = vunpack.c.h.b16 %v1895
    %v1986 = vunpack.c.l.b16 %v1896
    %v1987 = vunpack.c.h.b16 %v1896
    %v1988 = vunpack.c.l.b16 %v1897
    %v1989 = vunpack.c.h.b16 %v1897
    %v1990 = vunpack.c.l.b16 %v1898
    %v1991 = vunpack.c.h.b16 %v1898
    %v1992 = vunpack.c.l.b16 %v1899
    %v1993 = vunpack.c.h.b16 %v1899
    %v1994 = vunpack.c.l.b16 %v1900
    %v1995 = vunpack.c.h.b16 %v1900
    %v1996 = vunpack.c.l.b16 %v1901
    %v1997 = vunpack.c.h.b16 %v1901
    %v1998 = vunpack.c.l.b16 %v1902
    %v1999 = vunpack.c.h.b16 %v1902
    %v2000 = vunpack.c.l.b16 %v1903
    %v2001 = vunpack.c.h.b16 %v1903
    %v2002 = vunpack.c.l.b16 %v1904
    %v2003 = vunpack.c.h.b16 %v1904
    %v2004 = vunpack.c.l.b16 %v1905
    %v2005 = vunpack.c.h.b16 %v1905
    %v2006 = vunpack.c.l.b16 %v1906
    %v2007 = vunpack.c.h.b16 %v1906
    %v2008 = vunpack.c.l.b16 %v1907
    %v2009 = vunpack.c.h.b16 %v1907
    %v2010 = vunpack.c.l.b16 %v1908
    %v2011 = vunpack.c.h.b16 %v1908
    %v2012 = vunpack.c.l.b16 %v1909
    %v2013 = vunpack.c.h.b16 %v1909
    %v2014 = vunpack.c.l.b16 %v1910
    %v2015 = vunpack.c.h.b16 %v1910
    %v2016 = vunpack.c.l.b16 %v1911
    %v2017 = vunpack.c.h.b16 %v1911
    %v2018 = vunpack.c.l.b16 %v1912
    %v2019 = vunpack.c.h.b16 %v1912
    %v2020 = vunpack.c.l.b16 %v1913
    %v2021 = vunpack.c.h.b16 %v1913
    %v2022 = vpack.c.b16 %v1960, %v1958
    %v2023 = vpack.c.b16 %v1961, %v1959
    %v2024 = vpack.c.b16 %v1964, %v1962
    %v2025 = vpack.c.b16 %v1965, %v1963
    %v2026 = vpack.c.b16 %v1968, %v1966
    %v2027 = vpack.c.b16 %v1969, %v1967
    %v2028 = vpack.c.b16 %v1972, %v1970
    %v2029 = vpack.c.b16 %v1973, %v1971
    %v2030 = vpack.c.b16 %v1976, %v1974
    %v2031 = vpack.c.b16 %v1977, %v1975
    %v2032 = vpack.c.b16 %v1980, %v1978
    %v2033 = vpack.c.b16 %v1981, %v1979
    %v2034 = vpack.c.b16 %v1984, %v1982
    %v2035 = vpack.c.b16 %v1985, %v1983
    %v2036 = vpack.c.b16 %v1988, %v1986
    %v2037 = vpack.c.b16 %v1989, %v1987
    %v2038 = vpack.c.b16 %v1992, %v1990
    %v2039 = vpack.c.b16 %v1993, %v1991
    %v2040 = vpack.c.b16 %v1996, %v1994
    %v2041 = vpack.c.b16 %v1997, %v1995
    %v2042 = vpack.c.b16 %v2000, %v1998
    %v2043 = vpack.c.b16 %v2001, %v1999
    %v2044 = vpack.c.b16 %v2004, %v2002
    %v2045 = vpack.c.b16 %v2005, %v2003
    %v2046 = vpack.c.b16 %v2008, %v2006
    %v2047 = vpack.c.b16 %v2009, %v2007
    %v2048 = vpack.c.b16 %v2012, %v2010
    %v2049 = vpack.c.b16 %v2013, %v2011
    %v2050 = vpack.c.b16 %v2016, %v2014
    %v2051 = vpack.c.b16 %v2017, %v2015
    %v2052 = vpack.c.b16 %v2020, %v2018
    %v2053 = vpack.c.b16 %v2021, %v2019
    %2086 = vmatprep.subr.bf16.mxu0 %v2023
    %2087 = vmatpush1.bf16.msra.mxu0 %v2022
    %2088 = vmatprep.subr.bf16.mxu0 %v2025
    %2089 = vmatpush1.bf16.msra.mxu0 %v2024
    %2090 = vmatprep.subr.bf16.mxu0 %v2027
    %2091 = vmatpush1.bf16.msra.mxu0 %v2026
    %2092 = vmatprep.subr.bf16.mxu0 %v2029
    %2093 = vmatpush1.bf16.msra.mxu0 %v2028
    %2094 = vmatprep.subr.bf16.mxu0 %v2031
    %2095 = vmatpush1.bf16.msra.mxu0 %v2030
    %2096 = vmatprep.subr.bf16.mxu0 %v2033
    %2097 = vmatpush1.bf16.msra.mxu0 %v2032
    %2098 = vmatprep.subr.bf16.mxu0 %v2035
    %2099 = vmatpush1.bf16.msra.mxu0 %v2034
    %2100 = vmatprep.subr.bf16.mxu0 %v2037
    %2101 = vmatpush1.bf16.msra.mxu0 %v2036
    %2102 = vmatprep.subr.bf16.mxu0 %v2039
    %2103 = vmatpush1.bf16.msra.mxu0 %v2038
    %2104 = vmatprep.subr.bf16.mxu0 %v2041
    %2105 = vmatpush1.bf16.msra.mxu0 %v2040
    %2106 = vmatprep.subr.bf16.mxu0 %v2043
    %2107 = vmatpush1.bf16.msra.mxu0 %v2042
    %2108 = vmatprep.subr.bf16.mxu0 %v2045
    %2109 = vmatpush1.bf16.msra.mxu0 %v2044
    %2110 = vmatprep.subr.bf16.mxu0 %v2047
    %2111 = vmatpush1.bf16.msra.mxu0 %v2046
    %2112 = vmatprep.subr.bf16.mxu0 %v2049
    %2113 = vmatpush1.bf16.msra.mxu0 %v2048
    %2114 = vmatprep.subr.bf16.mxu0 %v2051
    %2115 = vmatpush1.bf16.msra.mxu0 %v2050
    %2116 = vmatprep.subr.bf16.mxu0 %v2053
    %2117 = vmatpush1.bf16.msra.mxu0 %v2052
    %2118 = vmatprep.mubr.bf16.mxu0 %v1881
    %2119 = vmatmul.mubr.bf16.gmra.mrb[0].mxu0 %v1880
    %v2120 = vpop.f32.mrb[0].mxu0
    %v2121 = vadd.f32 %v1919, %v2120
    %v2122 = vpop.f32.mrb[0].mxu0
    %v2123 = vadd.f32 %v1923, %v2122
    %v2124 = vpop.f32.mrb[0].mxu0
    %v2125 = vpop.f32.mrb[0].mxu0
    %2126 = vdwg.mxu0
    %v2127 = vlaneseq
    %v2128 = vand.u32 %v2127, 127
    %v2129 = vadd.s32 %v2128, 128
    %vm2130 = vcmp.lt.s32.totalorder %v2128, 187
    %vm2131 = vcmp.lt.s32.totalorder %v2129, 187
    %v2132 = vsel %vm2130, %v2121, -inf
    %v2133 = vsel %vm2131, %v2123, -inf
    %vm2134 = vcmask 1041408
    %v2135 = vsel %vm2134, %v2132, -inf
    %v2136 = vsel %vm2134, %v2133, -inf
    %v2137 = vmax.f32 %v2135, %v2136
    %2138 = vmax.xlane.f32.xlu0 %v2137
    %v2139 = vpop.xlane.xlu0 %2138
    %v2140 = vsub.f32 %v2132, %v2139
    %v2141 = vsub.f32 %v2133, %v2139
    %v2142 = vmul.f32 %v2140, 1.442695
    %v2143 = vpow.pop %v2142
    %v2144 = vmul.f32 %v2141, 1.442695
    %v2145 = vpow.pop %v2144
    %v2146 = vsel %vm2134, %v2143, 0.0
    %v2147 = vsel %vm2134, %v2145, 0.0
    %v2148 = vadd.f32 %v2146, %v2147
    %2149 = vadd.xlane.f32.xlu0 %v2148
    %v2150 = vpop.xlane.xlu0 %2149
    %v2151 = vlog2.pop %v2150
    %v2152 = vmul.f32 %v2151, 0.6931472
    %v2153 = vadd.f32 %v2139, %v2152
    %v2154 = vmin.f32 %v2121, 0.0
    %v2155 = vmin.f32 %v2123, 0.0
    %v2156 = vand.u32 2147483647, %v2121
    %v2157 = vand.u32 2147483647, %v2123
    %v2158 = vsub.f32 0.0, %v2156
    %v2159 = vsub.f32 0.0, %v2157
    %v2160 = vmul.f32 %v2158, 1.442695
    %v2161 = vpow.pop %v2160
    %v2162 = vmul.f32 %v2159, 1.442695
    %v2163 = vpow.pop %v2162
    %v2164 = vadd.f32 %v2161, 1.0
    %v2165 = vadd.f32 %v2163, 1.0
    %v2166 = vlog2.pop %v2164
    %v2167 = vmul.f32 %v2166, 0.6931472
    %v2168 = vlog2.pop %v2165
    %v2169 = vmul.f32 %v2168, 0.6931472
    %v2170 = vsub.f32 %v2154, %v2167
    %v2171 = vsub.f32 %v2155, %v2169
    %vm2172 = vcmp.eq.s32.totalorder %v2128, 187
    %vm2173 = vcmp.eq.s32.totalorder %v2129, 187
    %v2174 = vsel %vm2172, %v2170, 0.0
    %v2175 = vsel %vm2173, %v2171, 0.0
    %v2176 = vsel %vm2134, %v2174, 0.0
    %v2177 = vsel %vm2134, %v2175, 0.0
    %v2178 = vadd.f32 %v2176, %v2177
    %2179 = vadd.xlane.f32.xlu0 %v2178
    %v2180 = vpop.xlane.xlu0 %2179
    %v2181 = vmul.f32 %v2180, 1.442695
    %v2182 = vpow.pop %v2181
    %vm2183 = vcmask 1024
    %2184 = vst.msk [vmem:[%s17] sm:$0x3] %vm2183, %v2182
    %v2185 = vsub.f32 %v2170, %v2153
    %v2186 = vsub.f32 %v2171, %v2153
    %v2189 = vcombine.low %v2185, %v2186
    %v2191 = vunpack.c.l.s4 1983009808
    %v2192 = vunpack.c.0.s8 %v2191
    %v2193 = vlaneseq
    %v2194 = vshrl.u32 %v2193, 7
    %v2195 = vsub.s32 %v2192, %v2194
    %v2196 = vrot.slane %v2189, %v2195
    %vm2198 = vcmask 478210
    %vm2199 = vmor %vm2198, %vm2134
    %2200 = vst.msk [vmem:[%s18] sm:$0xf] %vm2199, %v2196
    // Predicated region
    $region102: #{policy_net_forward.1} parent=1 // pred_check
      _
    $region103: #{policy_net_forward.1} parent=1 // pred_check_branch
      %2202 = sbr.rel (0) target = $region105
    $region104: #{policy_net_forward.1} parent=1 // pred_region
      _
    $region105: #{policy_net_forward.1} parent=1 // pred_fallthru
      _
    // Predicated region
    $region106: #{policy_net_forward.1} parent=1 // pred_check
      _
    $region107: #{policy_net_forward.1} parent=1 // pred_check_branch
      %2204 = sbr.rel (0) target = $region109
    $region108: #{policy_net_forward.1} parent=1 // pred_region
      _
    $region109: #{policy_net_forward.1} parent=1 // pred_fallthru
      _
    // Predicated region
    $region110: #{policy_net_forward.1} parent=1 // pred_check
      _
    $region111: #{policy_net_forward.1} parent=1 // pred_check_branch
      %2206 = sbr.rel (0) target = $region113
    $region112: #{policy_net_forward.1} parent=1 // pred_region
      _
    $region113: #{policy_net_forward.1} parent=1 // pred_fallthru
      _
    // Predicated region
    $region114: #{policy_net_forward.1} parent=1 // pred_check
      _
    $region115: #{policy_net_forward.1} parent=1 // pred_check_branch
      %2208 = sbr.rel (0) target = $region117
    $region116: #{policy_net_forward.1} parent=1 // pred_region
      _
    $region117: #{policy_net_forward.1} parent=1 // pred_fallthru
      _
    %2209 = vsyncpa [#allocation3], 1
    %2210 = vsyncpa [#allocation5], 1
    %2211 = vsyncpa [#allocation8], 1
    %2212 = vsyncpa [#allocation11], 1
    %2213 = vsyncpa [#allocation14], 1

</llo_original>
